<compile_context>
chip_gen: v7x
topology: tpu7x:2x2x1
jax: 0.10.0
libtpu: 0.0.40
codegen_flags: <defaults>
</compile_context>

<pallas_src>
import functools

import numpy as np
import jax
import jax.numpy as jnp
from jax import lax
from jax.experimental import pallas as pl
from jax.experimental.pallas import tpu as pltpu


# 3x3 conv tap offsets, tap index t = dh*3 + dw, offsets (oh, ow) = (dh-1, dw-1)
_TAPS = [(dh - 1, dw - 1) for dh in range(3) for dw in range(3)]


def _leaky(x):
    # spec: nn.LeakyReLU(0.1)
    return jnp.where(x >= 0, x, 0.1 * x)


def _build_tap_masks(H, W):
    """(9, 1, H*W) float 0/1 masks: mask[t, 0, h*W+w] == 1 iff (h+oh, w+ow)
    lies inside the HxW image for tap t (zero padding of a 3x3 conv)."""
    HW = H * W
    masks = np.zeros((9, 1, HW), np.float32)
    for t, (oh, ow) in enumerate(_TAPS):
        m = np.zeros((H, W), np.float32)
        m[max(0, -oh):min(H, H - oh), max(0, -ow):min(W, W - ow)] = 1.0
        masks[t, 0] = m.reshape(HW)
    return jnp.asarray(masks)


def _rpab_kernel(dem_ref, rs_ref, mask_ref,
                 w_e1_ref, b_e1_ref, w_e2_ref, b_e2_ref,
                 w_rb1_ref, b_rb1_ref, w_rb2_ref, b_rb2_ref,
                 *out_refs, H, W, training):
    HW = H * W
    C = dem_ref.shape[1]

    dem = dem_ref[0]            # (C, HW), lane-dense
    rs = rs_ref[0]              # (C, HW)

    def shifted(x, t):
        """y[r, h*W+w] = x[r, (h+oh)*W + (w+ow)] if inside the image else 0."""
        oh, ow = _TAPS[t]
        s = oh * W + ow
        y = x if s == 0 else pltpu.roll(x, (-s) % HW, axis=1)   # XLU rotation
        return y * mask_ref[t]                                  # (R,HW)*(1,HW)

    # ---------------- rb(rs): conv3x3 -> leaky -> conv3x3 ----------------
    # conv1 as a single matmul: im2col stacks the 9 taps on the K axis.
    patches = jnp.concatenate([shifted(rs, t) for t in range(9)], axis=0)  # (9C, HW)
    mid = _leaky(jnp.dot(w_rb1_ref[...], patches,
                         preferred_element_type=jnp.float32) + b_rb1_ref[...])  # (Cmid, HW)

    # conv2 as a single matmul: taps stacked on the M axis, then shift-and-add
    # the per-tap planes (roll + mask) — no padded VMEM scratch needed.
    y = jnp.dot(w_rb2_ref[...], mid, preferred_element_type=jnp.float32)   # (9C, HW)
    rb_rs = b_rb2_ref[...] + shifted(y[0:C], 0)
    for t in range(1, 9):
        rb_rs = rb_rs + shifted(y[t * C:(t + 1) * C], t)                   # (C, HW)

    # ---------------- encode (1x1 convs as matmuls) ----------------
    # Training: batch dem & rs along the lane (column) axis -> one matmul chain.
    x = jnp.concatenate([dem, rs], axis=1) if training else dem
    h1 = _leaky(jnp.dot(w_e1_ref[...], x,
                        preferred_element_type=jnp.float32) + b_e1_ref[...])
    gate = jax.nn.sigmoid(jnp.dot(w_e2_ref[...], h1,
                                  preferred_element_type=jnp.float32) + b_e2_ref[...])

    buf_ref = out_refs[0]
    gate_dem = gate[:, :HW] if training else gate
    buf_ref[0] = (rb_rs * gate_dem + dem).astype(buf_ref.dtype)
    if training:
        buf_rs_ref = out_refs[1]
        buf_rs_ref[0] = (rb_rs * gate[:, HW:] + rs).astype(buf_rs_ref.dtype)


def rpab_forward(dem_nchw, rs_nchw, params, is_training):
    """dem/rs: (N, C, H, W) float32; params in PyTorch Conv2d (OIHW) layout.
    Returns (buffer, buffer_rs) if is_training == 1, else buffer — both NCHW."""
    N, C, H, W = dem_nchw.shape
    HW = H * W
    Cmid = params["w_e1"].shape[0]
    training = bool(is_training == 1)

    dem = dem_nchw.reshape(N, C, HW)        # free, contiguous
    rs = rs_nchw.reshape(N, C, HW)
    masks = _build_tap_masks(H, W)

    # Repack PyTorch OIHW conv weights into matmul-ready slabs (tiny, once).
    w_e1 = params["w_e1"].reshape(Cmid, C)
    w_e2 = params["w_e2"].reshape(C, Cmid)
    b_e1 = params["b_e1"].reshape(Cmid, 1)
    b_e2 = params["b_e2"].reshape(C, 1)
    # conv1 weights: K axis ordered (tap, cin)   -> (Cmid, 9*C)
    w_rb1 = jnp.transpose(params["w_rb1"], (2, 3, 1, 0)).reshape(9 * C, Cmid).T
    b_rb1 = params["b_rb1"].reshape(Cmid, 1)
    # conv2 weights: M axis ordered (tap, cout)  -> (9*C, Cmid)
    w_rb2 = jnp.transpose(params["w_rb2"], (2, 3, 0, 1)).reshape(9 * C, Cmid)
    b_rb2 = params["b_rb2"].reshape(C, 1)

    def tile(shape):
        return pl.BlockSpec((1,) + shape[1:],
                            lambda n: (n,) + (0,) * (len(shape) - 1))

    def full(shape):
        return pl.BlockSpec(shape, lambda n: (0,) * len(shape))

    in_specs = [
        tile((N, C, HW)),                 # dem  (per-batch tile)
        tile((N, C, HW)),                 # rs   (single HBM trip, no rs_pad)
        full((9, 1, HW)),                 # conv halo masks
        full((Cmid, C)), full((Cmid, 1)),         # encode conv1
        full((C, Cmid)), full((C, 1)),            # encode conv2
        full((Cmid, 9 * C)), full((Cmid, 1)),     # rb conv1
        full((9 * C, Cmid)), full((C, 1)),        # rb conv2
    ]

    out_shape = [jax.ShapeDtypeStruct((N, C, HW), dem_nchw.dtype)]
    out_specs = [tile((N, C, HW))]
    if training:
        out_shape.append(jax.ShapeDtypeStruct((N, C, HW), dem_nchw.dtype))
        out_specs.append(tile((N, C, HW)))

    # Advisory cost estimate so XLA schedules surrounding ops sensibly.
    enc_cols = (2 if training else 1) * HW
    flops = (2 * N * HW * (9 * C * Cmid + 9 * Cmid * C)
             + 2 * N * enc_cols * 2 * C * Cmid)
    transcendentals = N * enc_cols * C
    bytes_accessed = 4 * ((2 + len(out_shape)) * N * C * HW
                          + 9 * HW + 2 * 9 * C * Cmid + 2 * C * Cmid
                          + 2 * (C + Cmid))

    kernel = functools.partial(_rpab_kernel, H=H, W=W, training=training)
    outs = pl.pallas_call(
        kernel,
        grid_spec=pltpu.PrefetchScalarGridSpec(
            num_scalar_prefetch=0,
            grid=(N,),
            in_specs=in_specs,
            out_specs=out_specs,
        ),
        out_shape=out_shape,
        compiler_params=pltpu.CompilerParams(
            dimension_semantics=("parallel",),     # batch tiles -> v7x's 2 TCs
            vmem_limit_bytes=32 * 1024 * 1024,     # explicit; tiles are tiny
        ),
        cost_estimate=pl.CostEstimate(flops=flops,
                                      transcendentals=transcendentals,
                                      bytes_accessed=bytes_accessed),
    )(dem, rs, masks, w_e1, b_e1, w_e2, b_e2, w_rb1, b_rb1, w_rb2, b_rb2)

    if training:
        buf, buf_rs = outs
        return buf.reshape(N, C, H, W), buf_rs.reshape(N, C, H, W)
    return outs[0].reshape(N, C, H, W)


# ---------------------- pure-JAX reference (for checking) ----------------------
def rpab_reference(dem, rs, params):
    def conv(x, w, b, pad):
        y = lax.conv_general_dilated(x, w, (1, 1), [(pad, pad), (pad, pad)],
                                     dimension_numbers=("NCHW", "OIHW", "NCHW"))
        return y + b.reshape(1, -1, 1, 1)

    def rb(x):
        h = _leaky(conv(x, params["w_rb1"], params["b_rb1"], 1))
        return conv(h, params["w_rb2"], params["b_rb2"], 1)

    def encode(x):
        h = _leaky(conv(x, params["w_e1"], params["b_e1"], 0))
        return conv(h, params["w_e2"], params["b_e2"], 0)

    rb_rs = rb(rs)
    buf = rb_rs * jax.nn.sigmoid(encode(dem)) + dem
    buf_rs = rb_rs * jax.nn.sigmoid(encode(rs)) + rs
    return buf, buf_rs


def init_params(key, channels):
    cmid = channels // 16
    ks = jax.random.split(key, 8)
    s = 0.1
    return {
        "w_rb1": s * jax.random.normal(ks[0], (cmid, channels, 3, 3), jnp.float32),
        "b_rb1": s * jax.random.normal(ks[1], (cmid,), jnp.float32),
        "w_rb2": s * jax.random.normal(ks[2], (channels, cmid, 3, 3), jnp.float32),
        "b_rb2": s * jax.random.normal(ks[3], (channels,), jnp.float32),
        "w_e1": s * jax.random.normal(ks[4], (cmid, channels, 1, 1), jnp.float32),
        "b_e1": s * jax.random.normal(ks[5], (cmid,), jnp.float32),
        "w_e2": s * jax.random.normal(ks[6], (channels, cmid, 1, 1), jnp.float32),
        "b_e2": s * jax.random.normal(ks[7], (channels,), jnp.float32),
    }


if __name__ == "__main__":
    key = jax.random.PRNGKey(0)
    k_dem, k_rs, k_par = jax.random.split(key, 3)

    N, C, H, W = 2, 32, 16, 16          # channels=32 -> channels // 16 = 2
    dem = jax.random.normal(k_dem, (N, C, H, W), jnp.float32)
    rs = jax.random.normal(k_rs, (N, C, H, W), jnp.float32)
    params = init_params(k_par, C)

    # training path: returns (buffer, buffer_rs)
    buf, buf_rs = rpab_forward(dem, rs, params, is_training=1)
    jax.block_until_ready((buf, buf_rs))

    ref_buf, ref_buf_rs = rpab_reference(dem, rs, params)
    assert jnp.allclose(buf, ref_buf, atol=1e-4, rtol=1e-4)
    assert jnp.allclose(buf_rs, ref_buf_rs, atol=1e-4, rtol=1e-4)

    # inference path (is_training == 0): specialized kernel, returns only buffer
    buf_only = rpab_forward(dem, rs, params, is_training=0)
    jax.block_until_ready(buf_only)
    assert jnp.allclose(buf_only, ref_buf, atol=1e-4, rtol=1e-4)

    print("KERNEL_OK")
</pallas_src>

<mosaic_0001>
module attributes {stable_mosaic.version = 11 : i64} {
  func.func @_rpab_kernel(%arg0: i32, %arg1: memref<1x32x256xf32, #tpu.memory_space<vmem>>, %arg2: memref<1x32x256xf32, #tpu.memory_space<vmem>>, %arg3: memref<9x1x256xf32, #tpu.memory_space<vmem>>, %arg4: memref<2x32xf32, #tpu.memory_space<vmem>>, %arg5: memref<2x1xf32, #tpu.memory_space<vmem>>, %arg6: memref<32x2xf32, #tpu.memory_space<vmem>>, %arg7: memref<32x1xf32, #tpu.memory_space<vmem>>, %arg8: memref<2x288xf32, #tpu.memory_space<vmem>>, %arg9: memref<2x1xf32, #tpu.memory_space<vmem>>, %arg10: memref<288x2xf32, #tpu.memory_space<vmem>>, %arg11: memref<32x1xf32, #tpu.memory_space<vmem>>, %arg12: memref<1x32x256xf32, #tpu.memory_space<vmem>>, %arg13: memref<1x32x256xf32, #tpu.memory_space<vmem>>) attributes {dimension_semantics = [#tpu.dimension_semantics<parallel>], iteration_bounds = array<i64: 2>, scalar_prefetch = 0 : i64, scratch_operands = 0 : i64, tpu.core_type = #tpu.core_type<tc>, window_params = [{transform_indices = @transform_0, window_bounds = array<i64: 1, 32, 256>}, {transform_indices = @transform_1, window_bounds = array<i64: 1, 32, 256>}, {pipeline_mode = #tpu.pipeline_mode<synchronous>, transform_indices = @transform_2, window_bounds = array<i64: 9, 1, 256>}, {pipeline_mode = #tpu.pipeline_mode<synchronous>, transform_indices = @transform_3, window_bounds = array<i64: 2, 32>}, {pipeline_mode = #tpu.pipeline_mode<synchronous>, transform_indices = @transform_4, window_bounds = array<i64: 2, 1>}, {pipeline_mode = #tpu.pipeline_mode<synchronous>, transform_indices = @transform_5, window_bounds = array<i64: 32, 2>}, {pipeline_mode = #tpu.pipeline_mode<synchronous>, transform_indices = @transform_6, window_bounds = array<i64: 32, 1>}, {pipeline_mode = #tpu.pipeline_mode<synchronous>, transform_indices = @transform_7, window_bounds = array<i64: 2, 288>}, {pipeline_mode = #tpu.pipeline_mode<synchronous>, transform_indices = @transform_8, window_bounds = array<i64: 2, 1>}, {pipeline_mode = #tpu.pipeline_mode<synchronous>, transform_indices = @transform_9, window_bounds = array<i64: 288, 2>}, {pipeline_mode = #tpu.pipeline_mode<synchronous>, transform_indices = @transform_10, window_bounds = array<i64: 32, 1>}, {transform_indices = @transform_11, window_bounds = array<i64: 1, 32, 256>}, {transform_indices = @transform_12, window_bounds = array<i64: 1, 32, 256>}]} {
    %c0 = arith.constant 0 : index
    %c0_0 = arith.constant 0 : index
    %c0_1 = arith.constant 0 : index
    %0 = vector.load %arg1[%c0, %c0_0, %c0_1] : memref<1x32x256xf32, #tpu.memory_space<vmem>>, vector<1x32x256xf32>
    %1 = vector.shape_cast %0 : vector<1x32x256xf32> to vector<32x256xf32>
    %c0_2 = arith.constant 0 : index
    %c0_3 = arith.constant 0 : index
    %c0_4 = arith.constant 0 : index
    %2 = vector.load %arg2[%c0_2, %c0_3, %c0_4] : memref<1x32x256xf32, #tpu.memory_space<vmem>>, vector<1x32x256xf32>
    %3 = vector.shape_cast %2 : vector<1x32x256xf32> to vector<32x256xf32>
    %c17_i32 = arith.constant 17 : i32
    %4 = tpu.dynamic_rotate %3 by %c17_i32 dim 1 : vector<32x256xf32>, i32 -> vector<32x256xf32>
    %c0_5 = arith.constant 0 : index
    %c0_6 = arith.constant 0 : index
    %c0_7 = arith.constant 0 : index
    %5 = vector.load %arg3[%c0_5, %c0_6, %c0_7] : memref<9x1x256xf32, #tpu.memory_space<vmem>>, vector<1x1x256xf32>
    %6 = vector.shape_cast %5 : vector<1x1x256xf32> to vector<1x256xf32>
    %7 = vector.broadcast %6 : vector<1x256xf32> to vector<32x256xf32>
    %8 = arith.mulf %4, %7 : vector<32x256xf32>
    %c16_i32 = arith.constant 16 : i32
    %9 = tpu.dynamic_rotate %3 by %c16_i32 dim 1 : vector<32x256xf32>, i32 -> vector<32x256xf32>
    %c1 = arith.constant 1 : index
    %c0_8 = arith.constant 0 : index
    %c0_9 = arith.constant 0 : index
    %10 = vector.load %arg3[%c1, %c0_8, %c0_9] : memref<9x1x256xf32, #tpu.memory_space<vmem>>, vector<1x1x256xf32>
    %11 = vector.shape_cast %10 : vector<1x1x256xf32> to vector<1x256xf32>
    %12 = vector.broadcast %11 : vector<1x256xf32> to vector<32x256xf32>
    %13 = arith.mulf %9, %12 : vector<32x256xf32>
    %c15_i32 = arith.constant 15 : i32
    %14 = tpu.dynamic_rotate %3 by %c15_i32 dim 1 : vector<32x256xf32>, i32 -> vector<32x256xf32>
    %c2 = arith.constant 2 : index
    %c0_10 = arith.constant 0 : index
    %c0_11 = arith.constant 0 : index
    %15 = vector.load %arg3[%c2, %c0_10, %c0_11] : memref<9x1x256xf32, #tpu.memory_space<vmem>>, vector<1x1x256xf32>
    %16 = vector.shape_cast %15 : vector<1x1x256xf32> to vector<1x256xf32>
    %17 = vector.broadcast %16 : vector<1x256xf32> to vector<32x256xf32>
    %18 = arith.mulf %14, %17 : vector<32x256xf32>
    %c1_i32 = arith.constant 1 : i32
    %19 = tpu.dynamic_rotate %3 by %c1_i32 dim 1 : vector<32x256xf32>, i32 -> vector<32x256xf32>
    %c3 = arith.constant 3 : index
    %c0_12 = arith.constant 0 : index
    %c0_13 = arith.constant 0 : index
    %20 = vector.load %arg3[%c3, %c0_12, %c0_13] : memref<9x1x256xf32, #tpu.memory_space<vmem>>, vector<1x1x256xf32>
    %21 = vector.shape_cast %20 : vector<1x1x256xf32> to vector<1x256xf32>
    %22 = vector.broadcast %21 : vector<1x256xf32> to vector<32x256xf32>
    %23 = arith.mulf %19, %22 : vector<32x256xf32>
    %c4 = arith.constant 4 : index
    %c0_14 = arith.constant 0 : index
    %c0_15 = arith.constant 0 : index
    %24 = vector.load %arg3[%c4, %c0_14, %c0_15] : memref<9x1x256xf32, #tpu.memory_space<vmem>>, vector<1x1x256xf32>
    %25 = vector.shape_cast %24 : vector<1x1x256xf32> to vector<1x256xf32>
    %26 = vector.broadcast %25 : vector<1x256xf32> to vector<32x256xf32>
    %27 = arith.mulf %3, %26 : vector<32x256xf32>
    %c255_i32 = arith.constant 255 : i32
    %28 = tpu.dynamic_rotate %3 by %c255_i32 dim 1 : vector<32x256xf32>, i32 -> vector<32x256xf32>
    %c5 = arith.constant 5 : index
    %c0_16 = arith.constant 0 : index
    %c0_17 = arith.constant 0 : index
    %29 = vector.load %arg3[%c5, %c0_16, %c0_17] : memref<9x1x256xf32, #tpu.memory_space<vmem>>, vector<1x1x256xf32>
    %30 = vector.shape_cast %29 : vector<1x1x256xf32> to vector<1x256xf32>
    %31 = vector.broadcast %30 : vector<1x256xf32> to vector<32x256xf32>
    %32 = arith.mulf %28, %31 : vector<32x256xf32>
    %c241_i32 = arith.constant 241 : i32
    %33 = tpu.dynamic_rotate %3 by %c241_i32 dim 1 : vector<32x256xf32>, i32 -> vector<32x256xf32>
    %c6 = arith.constant 6 : index
    %c0_18 = arith.constant 0 : index
    %c0_19 = arith.constant 0 : index
    %34 = vector.load %arg3[%c6, %c0_18, %c0_19] : memref<9x1x256xf32, #tpu.memory_space<vmem>>, vector<1x1x256xf32>
    %35 = vector.shape_cast %34 : vector<1x1x256xf32> to vector<1x256xf32>
    %36 = vector.broadcast %35 : vector<1x256xf32> to vector<32x256xf32>
    %37 = arith.mulf %33, %36 : vector<32x256xf32>
    %c240_i32 = arith.constant 240 : i32
    %38 = tpu.dynamic_rotate %3 by %c240_i32 dim 1 : vector<32x256xf32>, i32 -> vector<32x256xf32>
    %c7 = arith.constant 7 : index
    %c0_20 = arith.constant 0 : index
    %c0_21 = arith.constant 0 : index
    %39 = vector.load %arg3[%c7, %c0_20, %c0_21] : memref<9x1x256xf32, #tpu.memory_space<vmem>>, vector<1x1x256xf32>
    %40 = vector.shape_cast %39 : vector<1x1x256xf32> to vector<1x256xf32>
    %41 = vector.broadcast %40 : vector<1x256xf32> to vector<32x256xf32>
    %42 = arith.mulf %38, %41 : vector<32x256xf32>
    %c239_i32 = arith.constant 239 : i32
    %43 = tpu.dynamic_rotate %3 by %c239_i32 dim 1 : vector<32x256xf32>, i32 -> vector<32x256xf32>
    %c8 = arith.constant 8 : index
    %c0_22 = arith.constant 0 : index
    %c0_23 = arith.constant 0 : index
    %44 = vector.load %arg3[%c8, %c0_22, %c0_23] : memref<9x1x256xf32, #tpu.memory_space<vmem>>, vector<1x1x256xf32>
    %45 = vector.shape_cast %44 : vector<1x1x256xf32> to vector<1x256xf32>
    %46 = vector.broadcast %45 : vector<1x256xf32> to vector<32x256xf32>
    %47 = arith.mulf %43, %46 : vector<32x256xf32>
    %48 = tpu.concatenate %8, %13, %18, %23, %27, %32, %37, %42, %47 in 0 : vector<32x256xf32>, vector<32x256xf32>, vector<32x256xf32>, vector<32x256xf32>, vector<32x256xf32>, vector<32x256xf32>, vector<32x256xf32>, vector<32x256xf32>, vector<32x256xf32> -> vector<288x256xf32>
    %c0_24 = arith.constant 0 : index
    %c0_25 = arith.constant 0 : index
    %49 = vector.load %arg8[%c0_24, %c0_25] : memref<2x288xf32, #tpu.memory_space<vmem>>, vector<2x288xf32>
    %cst = arith.constant dense<0.000000e+00> : vector<2x256xf32>
    %50 = tpu.matmul %49, %48, %cst {dimension_numbers = #tpu.dot_dimension_numbers<[1], [0], [0], [1], [0, 0, 1, 1], [], []>} : vector<2x288xf32>, vector<288x256xf32>, vector<2x256xf32> -> vector<2x256xf32>
    %c0_26 = arith.constant 0 : index
    %c0_27 = arith.constant 0 : index
    %51 = vector.load %arg9[%c0_26, %c0_27] : memref<2x1xf32, #tpu.memory_space<vmem>>, vector<2x1xf32>
    %52 = vector.broadcast %51 : vector<2x1xf32> to vector<2x256xf32>
    %53 = arith.addf %50, %52 : vector<2x256xf32>
    %cst_28 = arith.constant 0.000000e+00 : f32
    %54 = vector.broadcast %cst_28 : f32 to vector<2x256xf32>
    %55 = arith.cmpf oge, %53, %54 : vector<2x256xf32>
    %cst_29 = arith.constant 1.000000e-01 : f32
    %56 = vector.broadcast %cst_29 : f32 to vector<2x256xf32>
    %57 = arith.mulf %56, %53 : vector<2x256xf32>
    %58 = arith.select %55, %53, %57 : vector<2x256xi1>, vector<2x256xf32>
    %c0_30 = arith.constant 0 : index
    %c0_31 = arith.constant 0 : index
    %59 = vector.load %arg10[%c0_30, %c0_31] : memref<288x2xf32, #tpu.memory_space<vmem>>, vector<288x2xf32>
    %cst_32 = arith.constant dense<0.000000e+00> : vector<288x256xf32>
    %60 = tpu.matmul %59, %58, %cst_32 {dimension_numbers = #tpu.dot_dimension_numbers<[1], [0], [0], [1], [0, 0, 1, 1], [], []>} : vector<288x2xf32>, vector<2x256xf32>, vector<288x256xf32> -> vector<288x256xf32>
    %c0_33 = arith.constant 0 : index
    %c0_34 = arith.constant 0 : index
    %61 = vector.load %arg11[%c0_33, %c0_34] : memref<32x1xf32, #tpu.memory_space<vmem>>, vector<32x1xf32>
    %62 = vector.extract_strided_slice %60 {offsets = [0, 0], sizes = [32, 256], strides = [1, 1]} : vector<288x256xf32> to vector<32x256xf32>
    %c17_i32_35 = arith.constant 17 : i32
    %63 = tpu.dynamic_rotate %62 by %c17_i32_35 dim 1 : vector<32x256xf32>, i32 -> vector<32x256xf32>
    %c0_36 = arith.constant 0 : index
    %c0_37 = arith.constant 0 : index
    %c0_38 = arith.constant 0 : index
    %64 = vector.load %arg3[%c0_36, %c0_37, %c0_38] : memref<9x1x256xf32, #tpu.memory_space<vmem>>, vector<1x1x256xf32>
    %65 = vector.shape_cast %64 : vector<1x1x256xf32> to vector<1x256xf32>
    %66 = vector.broadcast %65 : vector<1x256xf32> to vector<32x256xf32>
    %67 = arith.mulf %63, %66 : vector<32x256xf32>
    %68 = vector.broadcast %61 : vector<32x1xf32> to vector<32x256xf32>
    %69 = arith.addf %68, %67 : vector<32x256xf32>
    %70 = vector.extract_strided_slice %60 {offsets = [32, 0], sizes = [32, 256], strides = [1, 1]} : vector<288x256xf32> to vector<32x256xf32>
    %c16_i32_39 = arith.constant 16 : i32
    %71 = tpu.dynamic_rotate %70 by %c16_i32_39 dim 1 : vector<32x256xf32>, i32 -> vector<32x256xf32>
    %c1_40 = arith.constant 1 : index
    %c0_41 = arith.constant 0 : index
    %c0_42 = arith.constant 0 : index
    %72 = vector.load %arg3[%c1_40, %c0_41, %c0_42] : memref<9x1x256xf32, #tpu.memory_space<vmem>>, vector<1x1x256xf32>
    %73 = vector.shape_cast %72 : vector<1x1x256xf32> to vector<1x256xf32>
    %74 = vector.broadcast %73 : vector<1x256xf32> to vector<32x256xf32>
    %75 = arith.mulf %71, %74 : vector<32x256xf32>
    %76 = arith.addf %69, %75 : vector<32x256xf32>
    %77 = vector.extract_strided_slice %60 {offsets = [64, 0], sizes = [32, 256], strides = [1, 1]} : vector<288x256xf32> to vector<32x256xf32>
    %c15_i32_43 = arith.constant 15 : i32
    %78 = tpu.dynamic_rotate %77 by %c15_i32_43 dim 1 : vector<32x256xf32>, i32 -> vector<32x256xf32>
    %c2_44 = arith.constant 2 : index
    %c0_45 = arith.constant 0 : index
    %c0_46 = arith.constant 0 : index
    %79 = vector.load %arg3[%c2_44, %c0_45, %c0_46] : memref<9x1x256xf32, #tpu.memory_space<vmem>>, vector<1x1x256xf32>
    %80 = vector.shape_cast %79 : vector<1x1x256xf32> to vector<1x256xf32>
    %81 = vector.broadcast %80 : vector<1x256xf32> to vector<32x256xf32>
    %82 = arith.mulf %78, %81 : vector<32x256xf32>
    %83 = arith.addf %76, %82 : vector<32x256xf32>
    %84 = vector.extract_strided_slice %60 {offsets = [96, 0], sizes = [32, 256], strides = [1, 1]} : vector<288x256xf32> to vector<32x256xf32>
    %c1_i32_47 = arith.constant 1 : i32
    %85 = tpu.dynamic_rotate %84 by %c1_i32_47 dim 1 : vector<32x256xf32>, i32 -> vector<32x256xf32>
    %c3_48 = arith.constant 3 : index
    %c0_49 = arith.constant 0 : index
    %c0_50 = arith.constant 0 : index
    %86 = vector.load %arg3[%c3_48, %c0_49, %c0_50] : memref<9x1x256xf32, #tpu.memory_space<vmem>>, vector<1x1x256xf32>
    %87 = vector.shape_cast %86 : vector<1x1x256xf32> to vector<1x256xf32>
    %88 = vector.broadcast %87 : vector<1x256xf32> to vector<32x256xf32>
    %89 = arith.mulf %85, %88 : vector<32x256xf32>
    %90 = arith.addf %83, %89 : vector<32x256xf32>
    %91 = vector.extract_strided_slice %60 {offsets = [128, 0], sizes = [32, 256], strides = [1, 1]} : vector<288x256xf32> to vector<32x256xf32>
    %c4_51 = arith.constant 4 : index
    %c0_52 = arith.constant 0 : index
    %c0_53 = arith.constant 0 : index
    %92 = vector.load %arg3[%c4_51, %c0_52, %c0_53] : memref<9x1x256xf32, #tpu.memory_space<vmem>>, vector<1x1x256xf32>
    %93 = vector.shape_cast %92 : vector<1x1x256xf32> to vector<1x256xf32>
    %94 = vector.broadcast %93 : vector<1x256xf32> to vector<32x256xf32>
    %95 = arith.mulf %91, %94 : vector<32x256xf32>
    %96 = arith.addf %90, %95 : vector<32x256xf32>
    %97 = vector.extract_strided_slice %60 {offsets = [160, 0], sizes = [32, 256], strides = [1, 1]} : vector<288x256xf32> to vector<32x256xf32>
    %c255_i32_54 = arith.constant 255 : i32
    %98 = tpu.dynamic_rotate %97 by %c255_i32_54 dim 1 : vector<32x256xf32>, i32 -> vector<32x256xf32>
    %c5_55 = arith.constant 5 : index
    %c0_56 = arith.constant 0 : index
    %c0_57 = arith.constant 0 : index
    %99 = vector.load %arg3[%c5_55, %c0_56, %c0_57] : memref<9x1x256xf32, #tpu.memory_space<vmem>>, vector<1x1x256xf32>
    %100 = vector.shape_cast %99 : vector<1x1x256xf32> to vector<1x256xf32>
    %101 = vector.broadcast %100 : vector<1x256xf32> to vector<32x256xf32>
    %102 = arith.mulf %98, %101 : vector<32x256xf32>
    %103 = arith.addf %96, %102 : vector<32x256xf32>
    %104 = vector.extract_strided_slice %60 {offsets = [192, 0], sizes = [32, 256], strides = [1, 1]} : vector<288x256xf32> to vector<32x256xf32>
    %c241_i32_58 = arith.constant 241 : i32
    %105 = tpu.dynamic_rotate %104 by %c241_i32_58 dim 1 : vector<32x256xf32>, i32 -> vector<32x256xf32>
    %c6_59 = arith.constant 6 : index
    %c0_60 = arith.constant 0 : index
    %c0_61 = arith.constant 0 : index
    %106 = vector.load %arg3[%c6_59, %c0_60, %c0_61] : memref<9x1x256xf32, #tpu.memory_space<vmem>>, vector<1x1x256xf32>
    %107 = vector.shape_cast %106 : vector<1x1x256xf32> to vector<1x256xf32>
    %108 = vector.broadcast %107 : vector<1x256xf32> to vector<32x256xf32>
    %109 = arith.mulf %105, %108 : vector<32x256xf32>
    %110 = arith.addf %103, %109 : vector<32x256xf32>
    %111 = vector.extract_strided_slice %60 {offsets = [224, 0], sizes = [32, 256], strides = [1, 1]} : vector<288x256xf32> to vector<32x256xf32>
    %c240_i32_62 = arith.constant 240 : i32
    %112 = tpu.dynamic_rotate %111 by %c240_i32_62 dim 1 : vector<32x256xf32>, i32 -> vector<32x256xf32>
    %c7_63 = arith.constant 7 : index
    %c0_64 = arith.constant 0 : index
    %c0_65 = arith.constant 0 : index
    %113 = vector.load %arg3[%c7_63, %c0_64, %c0_65] : memref<9x1x256xf32, #tpu.memory_space<vmem>>, vector<1x1x256xf32>
    %114 = vector.shape_cast %113 : vector<1x1x256xf32> to vector<1x256xf32>
    %115 = vector.broadcast %114 : vector<1x256xf32> to vector<32x256xf32>
    %116 = arith.mulf %112, %115 : vector<32x256xf32>
    %117 = arith.addf %110, %116 : vector<32x256xf32>
    %118 = vector.extract_strided_slice %60 {offsets = [256, 0], sizes = [32, 256], strides = [1, 1]} : vector<288x256xf32> to vector<32x256xf32>
    %c239_i32_66 = arith.constant 239 : i32
    %119 = tpu.dynamic_rotate %118 by %c239_i32_66 dim 1 : vector<32x256xf32>, i32 -> vector<32x256xf32>
    %c8_67 = arith.constant 8 : index
    %c0_68 = arith.constant 0 : index
    %c0_69 = arith.constant 0 : index
    %120 = vector.load %arg3[%c8_67, %c0_68, %c0_69] : memref<9x1x256xf32, #tpu.memory_space<vmem>>, vector<1x1x256xf32>
    %121 = vector.shape_cast %120 : vector<1x1x256xf32> to vector<1x256xf32>
    %122 = vector.broadcast %121 : vector<1x256xf32> to vector<32x256xf32>
    %123 = arith.mulf %119, %122 : vector<32x256xf32>
    %124 = arith.addf %117, %123 : vector<32x256xf32>
    %125 = tpu.concatenate %1, %3 in 1 : vector<32x256xf32>, vector<32x256xf32> -> vector<32x512xf32>
    %c0_70 = arith.constant 0 : index
    %c0_71 = arith.constant 0 : index
    %126 = vector.load %arg4[%c0_70, %c0_71] : memref<2x32xf32, #tpu.memory_space<vmem>>, vector<2x32xf32>
    %cst_72 = arith.constant dense<0.000000e+00> : vector<2x512xf32>
    %127 = tpu.matmul %126, %125, %cst_72 {dimension_numbers = #tpu.dot_dimension_numbers<[1], [0], [0], [1], [0, 0, 1, 1], [], []>} : vector<2x32xf32>, vector<32x512xf32>, vector<2x512xf32> -> vector<2x512xf32>
    %c0_73 = arith.constant 0 : index
    %c0_74 = arith.constant 0 : index
    %128 = vector.load %arg5[%c0_73, %c0_74] : memref<2x1xf32, #tpu.memory_space<vmem>>, vector<2x1xf32>
    %129 = vector.broadcast %128 : vector<2x1xf32> to vector<2x512xf32>
    %130 = arith.addf %127, %129 : vector<2x512xf32>
    %cst_75 = arith.constant 0.000000e+00 : f32
    %131 = vector.broadcast %cst_75 : f32 to vector<2x512xf32>
    %132 = arith.cmpf oge, %130, %131 : vector<2x512xf32>
    %cst_76 = arith.constant 1.000000e-01 : f32
    %133 = vector.broadcast %cst_76 : f32 to vector<2x512xf32>
    %134 = arith.mulf %133, %130 : vector<2x512xf32>
    %135 = arith.select %132, %130, %134 : vector<2x512xi1>, vector<2x512xf32>
    %c0_77 = arith.constant 0 : index
    %c0_78 = arith.constant 0 : index
    %136 = vector.load %arg6[%c0_77, %c0_78] : memref<32x2xf32, #tpu.memory_space<vmem>>, vector<32x2xf32>
    %cst_79 = arith.constant dense<0.000000e+00> : vector<32x512xf32>
    %137 = tpu.matmul %136, %135, %cst_79 {dimension_numbers = #tpu.dot_dimension_numbers<[1], [0], [0], [1], [0, 0, 1, 1], [], []>} : vector<32x2xf32>, vector<2x512xf32>, vector<32x512xf32> -> vector<32x512xf32>
    %c0_80 = arith.constant 0 : index
    %c0_81 = arith.constant 0 : index
    %138 = vector.load %arg7[%c0_80, %c0_81] : memref<32x1xf32, #tpu.memory_space<vmem>>, vector<32x1xf32>
    %139 = vector.broadcast %138 : vector<32x1xf32> to vector<32x512xf32>
    %140 = arith.addf %137, %139 : vector<32x512xf32>
    %141 = arith.negf %140 : vector<32x512xf32>
    %142 = math.exp %141 : vector<32x512xf32>
    %cst_82 = arith.constant 1.000000e+00 : f32
    %143 = vector.broadcast %cst_82 : f32 to vector<32x512xf32>
    %144 = arith.addf %143, %142 : vector<32x512xf32>
    %145 = arith.divf %143, %144 : vector<32x512xf32>
    %146 = vector.extract_strided_slice %145 {offsets = [0, 0], sizes = [32, 256], strides = [1, 1]} : vector<32x512xf32> to vector<32x256xf32>
    %147 = arith.mulf %124, %146 : vector<32x256xf32>
    %148 = arith.addf %147, %1 : vector<32x256xf32>
    %c0_83 = arith.constant 0 : index
    %c0_84 = arith.constant 0 : index
    %c0_85 = arith.constant 0 : index
    %149 = vector.load %arg12[%c0_83, %c0_84, %c0_85] : memref<1x32x256xf32, #tpu.memory_space<vmem>>, vector<1x32x256xf32>
    %150 = vector.shape_cast %149 : vector<1x32x256xf32> to vector<32x256xf32>
    %151 = vector.shape_cast %148 : vector<32x256xf32> to vector<1x32x256xf32>
    tpu.vector_store %arg12[%c0_83, %c0_84, %c0_85], %151 {strides = array<i32>} : memref<1x32x256xf32, #tpu.memory_space<vmem>>, vector<1x32x256xf32>,
    %152 = vector.extract_strided_slice %145 {offsets = [0, 256], sizes = [32, 256], strides = [1, 1]} : vector<32x512xf32> to vector<32x256xf32>
    %153 = arith.mulf %124, %152 : vector<32x256xf32>
    %154 = arith.addf %153, %3 : vector<32x256xf32>
    %c0_86 = arith.constant 0 : index
    %c0_87 = arith.constant 0 : index
    %c0_88 = arith.constant 0 : index
    %155 = vector.load %arg13[%c0_86, %c0_87, %c0_88] : memref<1x32x256xf32, #tpu.memory_space<vmem>>, vector<1x32x256xf32>
    %156 = vector.shape_cast %155 : vector<1x32x256xf32> to vector<32x256xf32>
    %157 = vector.shape_cast %154 : vector<32x256xf32> to vector<1x32x256xf32>
    tpu.vector_store %arg13[%c0_86, %c0_87, %c0_88], %157 {strides = array<i32>} : memref<1x32x256xf32, #tpu.memory_space<vmem>>, vector<1x32x256xf32>,
    return
  }
  func.func @transform_0(%arg0: i32) -> (i32, i32, i32) {
    %c0_i32 = arith.constant 0 : i32
    %c0_i32_0 = arith.constant 0 : i32
    %c0_i32_1 = arith.constant 0 : i32
    return %arg0, %c0_i32, %c0_i32_0 : i32, i32, i32
  }
  func.func @transform_1(%arg0: i32) -> (i32, i32, i32) {
    %c0_i32 = arith.constant 0 : i32
    %c0_i32_0 = arith.constant 0 : i32
    %c0_i32_1 = arith.constant 0 : i32
    return %arg0, %c0_i32, %c0_i32_0 : i32, i32, i32
  }
  func.func @transform_2(%arg0: i32) -> (i32, i32, i32) {
    %c0_i32 = arith.constant 0 : i32
    %c0_i32_0 = arith.constant 0 : i32
    %c0_i32_1 = arith.constant 0 : i32
    %c0_i32_2 = arith.constant 0 : i32
    return %c0_i32, %c0_i32_0, %c0_i32_1 : i32, i32, i32
  }
  func.func @transform_3(%arg0: i32) -> (i32, i32) {
    %c0_i32 = arith.constant 0 : i32
    %c0_i32_0 = arith.constant 0 : i32
    %c0_i32_1 = arith.constant 0 : i32
    return %c0_i32, %c0_i32_0 : i32, i32
  }
  func.func @transform_4(%arg0: i32) -> (i32, i32) {
    %c0_i32 = arith.constant 0 : i32
    %c0_i32_0 = arith.constant 0 : i32
    %c0_i32_1 = arith.constant 0 : i32
    return %c0_i32, %c0_i32_0 : i32, i32
  }
  func.func @transform_5(%arg0: i32) -> (i32, i32) {
    %c0_i32 = arith.constant 0 : i32
    %c0_i32_0 = arith.constant 0 : i32
    %c0_i32_1 = arith.constant 0 : i32
    return %c0_i32, %c0_i32_0 : i32, i32
  }
  func.func @transform_6(%arg0: i32) -> (i32, i32) {
    %c0_i32 = arith.constant 0 : i32
    %c0_i32_0 = arith.constant 0 : i32
    %c0_i32_1 = arith.constant 0 : i32
    return %c0_i32, %c0_i32_0 : i32, i32
  }
  func.func @transform_7(%arg0: i32) -> (i32, i32) {
    %c0_i32 = arith.constant 0 : i32
    %c0_i32_0 = arith.constant 0 : i32
    %c0_i32_1 = arith.constant 0 : i32
    return %c0_i32, %c0_i32_0 : i32, i32
  }
  func.func @transform_8(%arg0: i32) -> (i32, i32) {
    %c0_i32 = arith.constant 0 : i32
    %c0_i32_0 = arith.constant 0 : i32
    %c0_i32_1 = arith.constant 0 : i32
    return %c0_i32, %c0_i32_0 : i32, i32
  }
  func.func @transform_9(%arg0: i32) -> (i32, i32) {
    %c0_i32 = arith.constant 0 : i32
    %c0_i32_0 = arith.constant 0 : i32
    %c0_i32_1 = arith.constant 0 : i32
    return %c0_i32, %c0_i32_0 : i32, i32
  }
  func.func @transform_10(%arg0: i32) -> (i32, i32) {
    %c0_i32 = arith.constant 0 : i32
    %c0_i32_0 = arith.constant 0 : i32
    %c0_i32_1 = arith.constant 0 : i32
    return %c0_i32, %c0_i32_0 : i32, i32
  }
  func.func @transform_11(%arg0: i32) -> (i32, i32, i32) {
    %c0_i32 = arith.constant 0 : i32
    %c0_i32_0 = arith.constant 0 : i32
    %c0_i32_1 = arith.constant 0 : i32
    return %arg0, %c0_i32, %c0_i32_0 : i32, i32, i32
  }
  func.func @transform_12(%arg0: i32) -> (i32, i32, i32) {
    %c0_i32 = arith.constant 0 : i32
    %c0_i32_0 = arith.constant 0 : i32
    %c0_i32_1 = arith.constant 0 : i32
    return %arg0, %c0_i32, %c0_i32_0 : i32, i32, i32
  }
}

</mosaic_0001>

<llo_original>
// kernel: tpu_custom_call.1
$region0: #{tpu_custom_call.1}
  #allocation0 [shape = 'u32[]', space=smem, size = 0x4, offset = 0x4, fixed_abs, tag = 'smem constant byte address 0x4 - core index']
  #allocation1 [shape = 'u32[144,128]{1,0:T(1,128)}', space=vmem, size = 0x12000, scoped, tag = 'internal scratch']
  %s0 = inlined_call_operand.vmem [shape: f32[2,32,256], index: 0, kind: input, shape index: {}]
  %s1 = inlined_call_operand.vmem [shape: f32[2,32,256], index: 1, kind: input, shape index: {}]
  %s2 = inlined_call_operand.vmem [shape: f32[9,1,256], index: 2, kind: input, shape index: {}]
  %s3 = inlined_call_operand.vmem [shape: f32[2,32], index: 3, kind: input, shape index: {}]
  %s4 = inlined_call_operand.vmem [shape: f32[2,1], index: 4, kind: input, shape index: {}]
  %s5 = inlined_call_operand.vmem [shape: f32[32,2], index: 5, kind: input, shape index: {}]
  %s6 = inlined_call_operand.vmem [shape: f32[32,1], index: 6, kind: input, shape index: {}]
  %s7 = inlined_call_operand.vmem [shape: f32[2,288], index: 7, kind: input, shape index: {}]
  %s8 = inlined_call_operand.vmem [shape: f32[2,1], index: 8, kind: input, shape index: {}]
  %s9 = inlined_call_operand.vmem [shape: f32[288,2], index: 9, kind: input, shape index: {}]
  %s10 = inlined_call_operand.vmem [shape: f32[32,1], index: 10, kind: input, shape index: {}]
  %s11 = inlined_call_operand.hbm [shape: f32[2,32,256], index: 11, kind: output, shape index: {0}]
  %s12 = inlined_call_operand.hbm [shape: f32[2,32,256], index: 12, kind: output, shape index: {1}]
  %13 = xla_tuple %s11, %s12
  %s14 = sld [smem:[#allocation0]]
  $region85: #{tpu_custom_call.1} parent=0
    _
  %s16 = ssub.s32 1, %s14
  %s17 = scalar_select 0, %s16, %s14
  $region1: #{tpu_custom_call.1} parent=0
    #allocation2 [shape = 'u8[65536]{0}', space=vmem, size = 0x10000, scoped, tag = 'output window, operand 0']
    #allocation3 [shape = 's32[2]{0}', space=sflag, size = 0x8, scoped, tag = 'scoped memory for tpu_custom_call.1']
    #allocation4 [shape = 'u8[65536]{0}', space=vmem, size = 0x10000, scoped, tag = 'output window, operand 1']
    #allocation5 [shape = 's32[2]{0}', space=sflag, size = 0x8, scoped, tag = 'scoped memory for tpu_custom_call.1']
    %18 = vsyncpa [#allocation3], 0
    %s19 = scalar_lea.sflag [#allocation3], 1
    %20 = vsyncpa %s19, 0
    %21 = vsyncpa [#allocation5], 0
    %s22 = scalar_lea.sflag [#allocation5], 1
    %23 = vsyncpa %s22, 0
    loop: start=0, step=1, limit=4
    $region2: #{tpu_custom_call.1} parent=1 // loop_pre_header
      _
    $region3: #{tpu_custom_call.1} parent=1 // loop_header
      %s25 = sphi 0, %s29
      %p26 = scmp.ge.s32.totalorder %s25, 4
      %s35 = sphi 0, %s37
      %s38 = sphi 0, %s35
      %s39 = sphi 0, %s38
      %s55 = sphi 0, %s39
      %s61 = sphi 0, %s63
      %s64 = sphi 0, %s61
      %s65 = sphi 0, %s64
      %s81 = sphi 0, %s65
      %s85 = sphi 0, %s85
      %s87 = sphi 0, %s85
      %s88 = sphi 0, %s87
      %s102 = sphi 0, %s88
      %s106 = sphi 0, %s106
      %s108 = sphi 0, %s106
      %s109 = sphi 0, %s108
      %s123 = sphi 0, %s109
      %s127 = sphi 0, %s127
      %s129 = sphi 0, %s127
      %s130 = sphi 0, %s129
      %s144 = sphi 0, %s130
      %s148 = sphi 0, %s148
      %s150 = sphi 0, %s148
      %s151 = sphi 0, %s150
      %s165 = sphi 0, %s151
      %s169 = sphi 0, %s169
      %s171 = sphi 0, %s169
      %s172 = sphi 0, %s171
      %s186 = sphi 0, %s172
      %s190 = sphi 0, %s190
      %s192 = sphi 0, %s190
      %s193 = sphi 0, %s192
      %s207 = sphi 0, %s193
      %s211 = sphi 0, %s211
      %s213 = sphi 0, %s211
      %s214 = sphi 0, %s213
      %s228 = sphi 0, %s214
      %s232 = sphi 0, %s232
      %s234 = sphi 0, %s232
      %s235 = sphi 0, %s234
      %s249 = sphi 0, %s235
      %s253 = sphi 0, %s253
      %s255 = sphi 0, %s253
      %s256 = sphi 0, %s255
      %s270 = sphi 0, %s256
      %s276 = sphi 0, %s278
      %s279 = sphi 0, %s276
      %s280 = sphi 0, %s279
      %s296 = sphi 0, %s280
      %s302 = sphi 0, %s304
      %s305 = sphi 0, %s302
      %s306 = sphi 0, %s305
      %s322 = sphi 0, %s306
    $region4: #{tpu_custom_call.1} parent=1 // loop_header_branch
      %28 = sbr.rel (%p26) target = $region8
    $region5: #{tpu_custom_call.1} parent=1 // loop_body
      %s30 = ssub.s32 %s25, 1
      %s31 = ssub.s32 %s25, 2
      %s32 = sadd.s32 %s25, 1
      %s33 = ssub.s32 %s25, %s32
      %p34 = scmp.eq.s32.totalorder %s33, 0
      %s36 = sadd.s32 %s35, 1
      %s37 = scalar_select %p34, %s35, %s36
      %p40 = pneg %p34
      %p41 = scmp.eq.s32.totalorder %s25, 1
      %p42 = por %p40, %p41
      %p43 = scmp.ne.s32.totalorder %s35, %s38
      %p44 = scmp.eq.s32.totalorder %s25, 0
      %p45 = por %p43, %p44
      %p46 = scmp.ne.s32.totalorder %s35, %s38
      %p47 = scmp.eq.s32.totalorder %s30, 1
      %p48 = por %p46, %p47
      %p49 = scmp.ne.s32.totalorder %s38, %s39
      %p50 = scmp.eq.s32.totalorder %s30, 0
      %p51 = por %p49, %p50
      %p52 = scmp.ne.s32.totalorder %s38, %s39
      %p53 = scmp.eq.s32.totalorder %s31, 1
      %p54 = por %p52, %p53
      %p56 = scmp.ne.s32.totalorder %s39, %s55
      %p57 = scmp.eq.s32.totalorder %s31, 0
      %p58 = por %p56, %p57
      %s59 = ssub.s32 %s25, %s32
      %p60 = scmp.eq.s32.totalorder %s59, 0
      %s62 = sadd.s32 %s61, 1
      %s63 = scalar_select %p60, %s61, %s62
      %p66 = pneg %p60
      %p67 = scmp.eq.s32.totalorder %s25, 1
      %p68 = por %p66, %p67
      %p69 = scmp.ne.s32.totalorder %s61, %s64
      %p70 = scmp.eq.s32.totalorder %s25, 0
      %p71 = por %p69, %p70
      %p72 = scmp.ne.s32.totalorder %s61, %s64
      %p73 = scmp.eq.s32.totalorder %s30, 1
      %p74 = por %p72, %p73
      %p75 = scmp.ne.s32.totalorder %s64, %s65
      %p76 = scmp.eq.s32.totalorder %s30, 0
      %p77 = por %p75, %p76
      %p78 = scmp.ne.s32.totalorder %s64, %s65
      %p79 = scmp.eq.s32.totalorder %s31, 1
      %p80 = por %p78, %p79
      %p82 = scmp.ne.s32.totalorder %s65, %s81
      %p83 = scmp.eq.s32.totalorder %s31, 0
      %p84 = por %p82, %p83
      %s86 = sadd.s32 %s85, 1
      %p89 = scmp.eq.s32.totalorder %s25, 1
      %p90 = scmp.ne.s32.totalorder %s85, %s87
      %p91 = scmp.eq.s32.totalorder %s25, 0
      %p92 = por %p90, %p91
      %p93 = scmp.ne.s32.totalorder %s85, %s87
      %p94 = scmp.eq.s32.totalorder %s30, 1
      %p95 = por %p93, %p94
      %p96 = scmp.ne.s32.totalorder %s87, %s88
      %p97 = scmp.eq.s32.totalorder %s30, 0
      %p98 = por %p96, %p97
      %p99 = scmp.ne.s32.totalorder %s87, %s88
      %p100 = scmp.eq.s32.totalorder %s31, 1
      %p101 = por %p99, %p100
      %p103 = scmp.ne.s32.totalorder %s88, %s102
      %p104 = scmp.eq.s32.totalorder %s31, 0
      %p105 = por %p103, %p104
      %s107 = sadd.s32 %s106, 1
      %p110 = scmp.eq.s32.totalorder %s25, 1
      %p111 = scmp.ne.s32.totalorder %s106, %s108
      %p112 = scmp.eq.s32.totalorder %s25, 0
      %p113 = por %p111, %p112
      %p114 = scmp.ne.s32.totalorder %s106, %s108
      %p115 = scmp.eq.s32.totalorder %s30, 1
      %p116 = por %p114, %p115
      %p117 = scmp.ne.s32.totalorder %s108, %s109
      %p118 = scmp.eq.s32.totalorder %s30, 0
      %p119 = por %p117, %p118
      %p120 = scmp.ne.s32.totalorder %s108, %s109
      %p121 = scmp.eq.s32.totalorder %s31, 1
      %p122 = por %p120, %p121
      %p124 = scmp.ne.s32.totalorder %s109, %s123
      %p125 = scmp.eq.s32.totalorder %s31, 0
      %p126 = por %p124, %p125
      %s128 = sadd.s32 %s127, 1
      %p131 = scmp.eq.s32.totalorder %s25, 1
      %p132 = scmp.ne.s32.totalorder %s127, %s129
      %p133 = scmp.eq.s32.totalorder %s25, 0
      %p134 = por %p132, %p133
      %p135 = scmp.ne.s32.totalorder %s127, %s129
      %p136 = scmp.eq.s32.totalorder %s30, 1
      %p137 = por %p135, %p136
      %p138 = scmp.ne.s32.totalorder %s129, %s130
      %p139 = scmp.eq.s32.totalorder %s30, 0
      %p140 = por %p138, %p139
      %p141 = scmp.ne.s32.totalorder %s129, %s130
      %p142 = scmp.eq.s32.totalorder %s31, 1
      %p143 = por %p141, %p142
      %p145 = scmp.ne.s32.totalorder %s130, %s144
      %p146 = scmp.eq.s32.totalorder %s31, 0
      %p147 = por %p145, %p146
      %s149 = sadd.s32 %s148, 1
      %p152 = scmp.eq.s32.totalorder %s25, 1
      %p153 = scmp.ne.s32.totalorder %s148, %s150
      %p154 = scmp.eq.s32.totalorder %s25, 0
      %p155 = por %p153, %p154
      %p156 = scmp.ne.s32.totalorder %s148, %s150
      %p157 = scmp.eq.s32.totalorder %s30, 1
      %p158 = por %p156, %p157
      %p159 = scmp.ne.s32.totalorder %s150, %s151
      %p160 = scmp.eq.s32.totalorder %s30, 0
      %p161 = por %p159, %p160
      %p162 = scmp.ne.s32.totalorder %s150, %s151
      %p163 = scmp.eq.s32.totalorder %s31, 1
      %p164 = por %p162, %p163
      %p166 = scmp.ne.s32.totalorder %s151, %s165
      %p167 = scmp.eq.s32.totalorder %s31, 0
      %p168 = por %p166, %p167
      %s170 = sadd.s32 %s169, 1
      %p173 = scmp.eq.s32.totalorder %s25, 1
      %p174 = scmp.ne.s32.totalorder %s169, %s171
      %p175 = scmp.eq.s32.totalorder %s25, 0
      %p176 = por %p174, %p175
      %p177 = scmp.ne.s32.totalorder %s169, %s171
      %p178 = scmp.eq.s32.totalorder %s30, 1
      %p179 = por %p177, %p178
      %p180 = scmp.ne.s32.totalorder %s171, %s172
      %p181 = scmp.eq.s32.totalorder %s30, 0
      %p182 = por %p180, %p181
      %p183 = scmp.ne.s32.totalorder %s171, %s172
      %p184 = scmp.eq.s32.totalorder %s31, 1
      %p185 = por %p183, %p184
      %p187 = scmp.ne.s32.totalorder %s172, %s186
      %p188 = scmp.eq.s32.totalorder %s31, 0
      %p189 = por %p187, %p188
      %s191 = sadd.s32 %s190, 1
      %p194 = scmp.eq.s32.totalorder %s25, 1
      %p195 = scmp.ne.s32.totalorder %s190, %s192
      %p196 = scmp.eq.s32.totalorder %s25, 0
      %p197 = por %p195, %p196
      %p198 = scmp.ne.s32.totalorder %s190, %s192
      %p199 = scmp.eq.s32.totalorder %s30, 1
      %p200 = por %p198, %p199
      %p201 = scmp.ne.s32.totalorder %s192, %s193
      %p202 = scmp.eq.s32.totalorder %s30, 0
      %p203 = por %p201, %p202
      %p204 = scmp.ne.s32.totalorder %s192, %s193
      %p205 = scmp.eq.s32.totalorder %s31, 1
      %p206 = por %p204, %p205
      %p208 = scmp.ne.s32.totalorder %s193, %s207
      %p209 = scmp.eq.s32.totalorder %s31, 0
      %p210 = por %p208, %p209
      %s212 = sadd.s32 %s211, 1
      %p215 = scmp.eq.s32.totalorder %s25, 1
      %p216 = scmp.ne.s32.totalorder %s211, %s213
      %p217 = scmp.eq.s32.totalorder %s25, 0
      %p218 = por %p216, %p217
      %p219 = scmp.ne.s32.totalorder %s211, %s213
      %p220 = scmp.eq.s32.totalorder %s30, 1
      %p221 = por %p219, %p220
      %p222 = scmp.ne.s32.totalorder %s213, %s214
      %p223 = scmp.eq.s32.totalorder %s30, 0
      %p224 = por %p222, %p223
      %p225 = scmp.ne.s32.totalorder %s213, %s214
      %p226 = scmp.eq.s32.totalorder %s31, 1
      %p227 = por %p225, %p226
      %p229 = scmp.ne.s32.totalorder %s214, %s228
      %p230 = scmp.eq.s32.totalorder %s31, 0
      %p231 = por %p229, %p230
      %s233 = sadd.s32 %s232, 1
      %p236 = scmp.eq.s32.totalorder %s25, 1
      %p237 = scmp.ne.s32.totalorder %s232, %s234
      %p238 = scmp.eq.s32.totalorder %s25, 0
      %p239 = por %p237, %p238
      %p240 = scmp.ne.s32.totalorder %s232, %s234
      %p241 = scmp.eq.s32.totalorder %s30, 1
      %p242 = por %p240, %p241
      %p243 = scmp.ne.s32.totalorder %s234, %s235
      %p244 = scmp.eq.s32.totalorder %s30, 0
      %p245 = por %p243, %p244
      %p246 = scmp.ne.s32.totalorder %s234, %s235
      %p247 = scmp.eq.s32.totalorder %s31, 1
      %p248 = por %p246, %p247
      %p250 = scmp.ne.s32.totalorder %s235, %s249
      %p251 = scmp.eq.s32.totalorder %s31, 0
      %p252 = por %p250, %p251
      %s254 = sadd.s32 %s253, 1
      %p257 = scmp.eq.s32.totalorder %s25, 1
      %p258 = scmp.ne.s32.totalorder %s253, %s255
      %p259 = scmp.eq.s32.totalorder %s25, 0
      %p260 = por %p258, %p259
      %p261 = scmp.ne.s32.totalorder %s253, %s255
      %p262 = scmp.eq.s32.totalorder %s30, 1
      %p263 = por %p261, %p262
      %p264 = scmp.ne.s32.totalorder %s255, %s256
      %p265 = scmp.eq.s32.totalorder %s30, 0
      %p266 = por %p264, %p265
      %p267 = scmp.ne.s32.totalorder %s255, %s256
      %p268 = scmp.eq.s32.totalorder %s31, 1
      %p269 = por %p267, %p268
      %p271 = scmp.ne.s32.totalorder %s256, %s270
      %p272 = scmp.eq.s32.totalorder %s31, 0
      %p273 = por %p271, %p272
      %s274 = ssub.s32 %s25, %s32
      %p275 = scmp.eq.s32.totalorder %s274, 0
      %s277 = sadd.s32 %s276, 1
      %s278 = scalar_select %p275, %s276, %s277
      %p281 = pneg %p275
      %p282 = scmp.eq.s32.totalorder %s25, 1
      %p283 = por %p281, %p282
      %p284 = scmp.ne.s32.totalorder %s276, %s279
      %p285 = scmp.eq.s32.totalorder %s25, 0
      %p286 = por %p284, %p285
      %p287 = scmp.ne.s32.totalorder %s276, %s279
      %p288 = scmp.eq.s32.totalorder %s30, 1
      %p289 = por %p287, %p288
      %p290 = scmp.ne.s32.totalorder %s279, %s280
      %p291 = scmp.eq.s32.totalorder %s30, 0
      %p292 = por %p290, %p291
      %p293 = scmp.ne.s32.totalorder %s279, %s280
      %p294 = scmp.eq.s32.totalorder %s31, 1
      %p295 = por %p293, %p294
      %p297 = scmp.ne.s32.totalorder %s280, %s296
      %p298 = scmp.eq.s32.totalorder %s31, 0
      %p299 = por %p297, %p298
      %s300 = ssub.s32 %s25, %s32
      %p301 = scmp.eq.s32.totalorder %s300, 0
      %s303 = sadd.s32 %s302, 1
      %s304 = scalar_select %p301, %s302, %s303
      %p307 = pneg %p301
      %p308 = scmp.eq.s32.totalorder %s25, 1
      %p309 = por %p307, %p308
      %p310 = scmp.ne.s32.totalorder %s302, %s305
      %p311 = scmp.eq.s32.totalorder %s25, 0
      %p312 = por %p310, %p311
      %p313 = scmp.ne.s32.totalorder %s302, %s305
      %p314 = scmp.eq.s32.totalorder %s30, 1
      %p315 = por %p313, %p314
      %p316 = scmp.ne.s32.totalorder %s305, %s306
      %p317 = scmp.eq.s32.totalorder %s30, 0
      %p318 = por %p316, %p317
      %p319 = scmp.ne.s32.totalorder %s305, %s306
      %p320 = scmp.eq.s32.totalorder %s31, 1
      %p321 = por %p319, %p320
      %p323 = scmp.ne.s32.totalorder %s306, %s322
      %p324 = scmp.eq.s32.totalorder %s31, 0
      %p325 = por %p323, %p324
      %p326 = scmp.le.s32.totalorder 1, %s25
      %p327 = scmp.lt.s32.totalorder %s25, 3
      %p328 = pnand %p326, %p327
      %p329 = pneg %p328
      // Predicated region
      $region9: #{tpu_custom_call.1} parent=5 // pred_check
        _
      $region10: #{tpu_custom_call.1} parent=5 // pred_check_branch
        %331 = sbr.rel (%p328) target = $region12
      $region11: #{tpu_custom_call.1} parent=5 // pred_region
        %s332 = ssub.s32 %s25, 1
        // Predicated region
        $region13: #{tpu_custom_call.1} parent=11 // pred_check
          %p333 = pneg %p98
        $region14: #{tpu_custom_call.1} parent=11 // pred_check_branch
          %335 = sbr.rel (%p333) target = $region16
        $region15: #{tpu_custom_call.1} parent=11 // pred_region
          _
        $region16: #{tpu_custom_call.1} parent=11 // pred_fallthru
          _
        // Predicated region
        $region17: #{tpu_custom_call.1} parent=11 // pred_check
          %p336 = pneg %p119
        $region18: #{tpu_custom_call.1} parent=11 // pred_check_branch
          %338 = sbr.rel (%p336) target = $region20
        $region19: #{tpu_custom_call.1} parent=11 // pred_region
          _
        $region20: #{tpu_custom_call.1} parent=11 // pred_fallthru
          _
        // Predicated region
        $region21: #{tpu_custom_call.1} parent=11 // pred_check
          %p339 = pneg %p140
        $region22: #{tpu_custom_call.1} parent=11 // pred_check_branch
          %341 = sbr.rel (%p339) target = $region24
        $region23: #{tpu_custom_call.1} parent=11 // pred_region
          _
        $region24: #{tpu_custom_call.1} parent=11 // pred_fallthru
          _
        // Predicated region
        $region25: #{tpu_custom_call.1} parent=11 // pred_check
          %p342 = pneg %p161
        $region26: #{tpu_custom_call.1} parent=11 // pred_check_branch
          %344 = sbr.rel (%p342) target = $region28
        $region27: #{tpu_custom_call.1} parent=11 // pred_region
          _
        $region28: #{tpu_custom_call.1} parent=11 // pred_fallthru
          _
        // Predicated region
        $region29: #{tpu_custom_call.1} parent=11 // pred_check
          %p345 = pneg %p182
        $region30: #{tpu_custom_call.1} parent=11 // pred_check_branch
          %347 = sbr.rel (%p345) target = $region32
        $region31: #{tpu_custom_call.1} parent=11 // pred_region
          _
        $region32: #{tpu_custom_call.1} parent=11 // pred_fallthru
          _
        // Predicated region
        $region33: #{tpu_custom_call.1} parent=11 // pred_check
          %p348 = pneg %p203
        $region34: #{tpu_custom_call.1} parent=11 // pred_check_branch
          %350 = sbr.rel (%p348) target = $region36
        $region35: #{tpu_custom_call.1} parent=11 // pred_region
          _
        $region36: #{tpu_custom_call.1} parent=11 // pred_fallthru
          _
        // Predicated region
        $region37: #{tpu_custom_call.1} parent=11 // pred_check
          %p351 = pneg %p224
        $region38: #{tpu_custom_call.1} parent=11 // pred_check_branch
          %353 = sbr.rel (%p351) target = $region40
        $region39: #{tpu_custom_call.1} parent=11 // pred_region
          _
        $region40: #{tpu_custom_call.1} parent=11 // pred_fallthru
          _
        // Predicated region
        $region41: #{tpu_custom_call.1} parent=11 // pred_check
          %p354 = pneg %p245
        $region42: #{tpu_custom_call.1} parent=11 // pred_check_branch
          %356 = sbr.rel (%p354) target = $region44
        $region43: #{tpu_custom_call.1} parent=11 // pred_region
          _
        $region44: #{tpu_custom_call.1} parent=11 // pred_fallthru
          _
        // Predicated region
        $region45: #{tpu_custom_call.1} parent=11 // pred_check
          %p357 = pneg %p266
        $region46: #{tpu_custom_call.1} parent=11 // pred_check_branch
          %359 = sbr.rel (%p357) target = $region48
        $region47: #{tpu_custom_call.1} parent=11 // pred_region
          _
        $region48: #{tpu_custom_call.1} parent=11 // pred_fallthru
          _
      $region12: #{tpu_custom_call.1} parent=5 // pred_fallthru
        _
      %p360 = scmp.lt.s32.totalorder %s25, 2
      // Predicated region
      $region49: #{tpu_custom_call.1} parent=5 // pred_check
        %p361 = pneg %p360
      $region50: #{tpu_custom_call.1} parent=5 // pred_check_branch
        %363 = sbr.rel (%p361) target = $region52
      $region51: #{tpu_custom_call.1} parent=5 // pred_region
        // Predicated region
        $region53: #{tpu_custom_call.1} parent=51 // pred_check
          %p364 = pneg %p45
        $region54: #{tpu_custom_call.1} parent=51 // pred_check_branch
          %366 = sbr.rel (%p364) target = $region56
        $region55: #{tpu_custom_call.1} parent=51 // pred_region
          %p367 = scmp.lt.s32.totalorder %s25, 1
          %s368 = scalar_select %p367, %s25, 1
          %s369 = smul.addr %s368, 8
          %s370 = smul.addr %s369, 8
          %s371 = scalar_lea.vmem %s0, %s370
        $region56: #{tpu_custom_call.1} parent=51 // pred_fallthru
          _
        // Predicated region
        $region57: #{tpu_custom_call.1} parent=51 // pred_check
          %p372 = pneg %p71
        $region58: #{tpu_custom_call.1} parent=51 // pred_check_branch
          %374 = sbr.rel (%p372) target = $region60
        $region59: #{tpu_custom_call.1} parent=51 // pred_region
          %p375 = scmp.lt.s32.totalorder %s25, 1
          %s376 = scalar_select %p375, %s25, 1
          %s377 = smul.addr %s376, 8
          %s378 = smul.addr %s377, 8
          %s379 = scalar_lea.vmem %s1, %s378
        $region60: #{tpu_custom_call.1} parent=51 // pred_fallthru
          _
      $region52: #{tpu_custom_call.1} parent=5 // pred_fallthru
        _
      %p380 = scmp.le.s32.totalorder 1, %s25
      %p381 = scmp.lt.s32.totalorder %s25, 3
      %p382 = pnand %p380, %p381
      %p383 = pneg %p382
      // Predicated region
      $region61: #{tpu_custom_call.1} parent=5 // pred_check
        _
      $region62: #{tpu_custom_call.1} parent=5 // pred_check_branch
        %385 = sbr.rel (%p382) target = $region64
      $region63: #{tpu_custom_call.1} parent=5 // pred_region
        %s386 = ssub.s32 %s25, 1
        %p387 = scmp.lt.s32.totalorder %s30, 1
        %s388 = scalar_select %p387, %s30, 1
        %s389 = smul.addr %s388, 8
        %s390 = smul.addr %s389, 8
        %s391 = scalar_lea.vmem %s0, %s390
        %p392 = pneg %p51
        %p393 = pneg %p48
        %p394 = scmp.lt.s32.totalorder %s30, 1
        %s395 = scalar_select %p394, %s30, 1
        %s396 = smul.addr %s395, 8
        %s397 = smul.addr %s396, 8
        %s398 = scalar_lea.vmem %s1, %s397
        %p399 = pneg %p77
        %p400 = pneg %p74
        %p401 = pneg %p98
        %p402 = pneg %p95
        %p403 = pneg %p119
        %p404 = pneg %p116
        %p405 = pneg %p140
        %p406 = pneg %p137
        %p407 = pneg %p161
        %p408 = pneg %p158
        %p409 = pneg %p182
        %p410 = pneg %p179
        %p411 = pneg %p203
        %p412 = pneg %p200
        %p413 = pneg %p224
        %p414 = pneg %p221
        %p415 = pneg %p245
        %p416 = pneg %p242
        %p417 = pneg %p266
        %p418 = pneg %p263
        %p419 = pneg %p292
        %p420 = pneg %p289
        %s421 = sand.u32 %s279, 1
        %s422 = scalar_lea.sflag [#allocation3], %s421
        %s423 = sand.u32 %s279, 1
        %s424 = smul.addr %s423, 64
        %s425 = scalar_lea.vmem [#allocation2], %s424
        %p426 = pneg %p318
        %p427 = pneg %p315
        %s428 = sand.u32 %s305, 1
        %s429 = scalar_lea.sflag [#allocation5], %s428
        %s430 = sand.u32 %s305, 1
        %s431 = smul.addr %s430, 64
        %s432 = scalar_lea.vmem [#allocation4], %s431
        %p433 = scmp.lt.s32.totalorder %s30, 1
        %s434 = scalar_select %p433, %s30, 1
        %s435 = smul.addr %s434, 8
        %s436 = smul.addr %s435, 8
        %s437 = scalar_lea.vmem %s0, %s436
        %p438 = scmp.lt.s32.totalorder %s30, 1
        %s439 = scalar_select %p438, %s30, 1
        %s440 = smul.addr %s439, 8
        %s441 = smul.addr %s440, 8
        %s442 = scalar_lea.vmem %s1, %s441
        %v443 = vld [vmem:[%s437] sm:$0xff]
        %v444 = vld [vmem:[%s437 + $0x8] sm:$0xff]
        %v445 = vld [vmem:[%s437 + $0x10] sm:$0xff]
        %v446 = vld [vmem:[%s437 + $0x18] sm:$0xff]
        %v447 = vld [vmem:[%s437 + $0x20] sm:$0xff]
        %v448 = vld [vmem:[%s437 + $0x28] sm:$0xff]
        %v449 = vld [vmem:[%s437 + $0x30] sm:$0xff]
        %v450 = vld [vmem:[%s437 + $0x38] sm:$0xff]
        %v451 = vld [vmem:[%s442] sm:$0xff]
        %v452 = vld [vmem:[%s442 + $0x8] sm:$0xff]
        %v453 = vld [vmem:[%s442 + $0x10] sm:$0xff]
        %v454 = vld [vmem:[%s442 + $0x18] sm:$0xff]
        %v455 = vld [vmem:[%s442 + $0x20] sm:$0xff]
        %v456 = vld [vmem:[%s442 + $0x28] sm:$0xff]
        %v457 = vld [vmem:[%s442 + $0x30] sm:$0xff]
        %v458 = vld [vmem:[%s442 + $0x38] sm:$0xff]
        %459 = vrot.lane.b32.xlu0 %v451, 17
        %v460 = vpop.permute.xlu0 %459
        %461 = vrot.lane.b32.xlu0 %v453, 17
        %v462 = vpop.permute.xlu0 %461
        %463 = vrot.lane.b32.xlu0 %v455, 17
        %v464 = vpop.permute.xlu0 %463
        %465 = vrot.lane.b32.xlu0 %v457, 17
        %v466 = vpop.permute.xlu0 %465
        %467 = vrot.lane.b32.xlu0 %v452, 17
        %v468 = vpop.permute.xlu0 %467
        %469 = vrot.lane.b32.xlu0 %v454, 17
        %v470 = vpop.permute.xlu0 %469
        %471 = vrot.lane.b32.xlu0 %v456, 17
        %v472 = vpop.permute.xlu0 %471
        %473 = vrot.lane.b32.xlu0 %v458, 17
        %v474 = vpop.permute.xlu0 %473
        %v475 = vlaneseq
        %v476 = vand.u32 %v475, 127
        %vm477 = vcmp.lt.s32.totalorder %v476, 17
        %v478 = vsel %vm477, %v460, %v468
        %v479 = vsel %vm477, %v462, %v470
        %v480 = vsel %vm477, %v464, %v472
        %v481 = vsel %vm477, %v466, %v474
        %v482 = vsel %vm477, %v468, %v460
        %v483 = vsel %vm477, %v470, %v462
        %v484 = vsel %vm477, %v472, %v464
        %v485 = vsel %vm477, %v474, %v466
        %v486 = vld [vmem:[%s2] sm:$0x3]
        %v488 = vlaneseq
        %v489 = vshrl.u32 %v488, 7
        %v490 = vsub.s32 0, %v489
        %v491 = vrot.slane %v486, %v490
        %v492 = vlaneseq
        %v493 = vshrl.u32 %v492, 7
        %v494 = vsub.s32 1, %v493
        %v495 = vrot.slane %v486, %v494
        %v498 = vmul.f32 %v482, %v491
        %v499 = vmul.f32 %v478, %v495
        %v500 = vmul.f32 %v483, %v491
        %v501 = vmul.f32 %v479, %v495
        %v502 = vmul.f32 %v484, %v491
        %v503 = vmul.f32 %v480, %v495
        %v504 = vmul.f32 %v485, %v491
        %v505 = vmul.f32 %v481, %v495
        %506 = vrot.lane.b32.xlu0 %v451, 16
        %v507 = vpop.permute.xlu0 %506
        %508 = vrot.lane.b32.xlu0 %v453, 16
        %v509 = vpop.permute.xlu0 %508
        %510 = vrot.lane.b32.xlu0 %v455, 16
        %v511 = vpop.permute.xlu0 %510
        %512 = vrot.lane.b32.xlu0 %v457, 16
        %v513 = vpop.permute.xlu0 %512
        %514 = vrot.lane.b32.xlu0 %v452, 16
        %v515 = vpop.permute.xlu0 %514
        %516 = vrot.lane.b32.xlu0 %v454, 16
        %v517 = vpop.permute.xlu0 %516
        %518 = vrot.lane.b32.xlu0 %v456, 16
        %v519 = vpop.permute.xlu0 %518
        %520 = vrot.lane.b32.xlu0 %v458, 16
        %v521 = vpop.permute.xlu0 %520
        %vm522 = vcmp.lt.s32.totalorder %v476, 16
        %v523 = vsel %vm522, %v507, %v515
        %v524 = vsel %vm522, %v509, %v517
        %v525 = vsel %vm522, %v511, %v519
        %v526 = vsel %vm522, %v513, %v521
        %v527 = vsel %vm522, %v515, %v507
        %v528 = vsel %vm522, %v517, %v509
        %v529 = vsel %vm522, %v519, %v511
        %v530 = vsel %vm522, %v521, %v513
        %s531 = scalar_lea.vmem %s2, 2
        %v532 = vld [vmem:[%s531] sm:$0x3]
        %v534 = vlaneseq
        %v535 = vshrl.u32 %v534, 7
        %v536 = vsub.s32 0, %v535
        %v537 = vrot.slane %v532, %v536
        %v538 = vlaneseq
        %v539 = vshrl.u32 %v538, 7
        %v540 = vsub.s32 1, %v539
        %v541 = vrot.slane %v532, %v540
        %v544 = vmul.f32 %v527, %v537
        %v545 = vmul.f32 %v523, %v541
        %v546 = vmul.f32 %v528, %v537
        %v547 = vmul.f32 %v524, %v541
        %v548 = vmul.f32 %v529, %v537
        %v549 = vmul.f32 %v525, %v541
        %v550 = vmul.f32 %v530, %v537
        %v551 = vmul.f32 %v526, %v541
        %552 = vrot.lane.b32.xlu0 %v451, 15
        %v553 = vpop.permute.xlu0 %552
        %554 = vrot.lane.b32.xlu0 %v453, 15
        %v555 = vpop.permute.xlu0 %554
        %556 = vrot.lane.b32.xlu0 %v455, 15
        %v557 = vpop.permute.xlu0 %556
        %558 = vrot.lane.b32.xlu0 %v457, 15
        %v559 = vpop.permute.xlu0 %558
        %560 = vrot.lane.b32.xlu0 %v452, 15
        %v561 = vpop.permute.xlu0 %560
        %562 = vrot.lane.b32.xlu0 %v454, 15
        %v563 = vpop.permute.xlu0 %562
        %564 = vrot.lane.b32.xlu0 %v456, 15
        %v565 = vpop.permute.xlu0 %564
        %566 = vrot.lane.b32.xlu0 %v458, 15
        %v567 = vpop.permute.xlu0 %566
        %vm568 = vcmp.lt.s32.totalorder %v476, 15
        %v569 = vsel %vm568, %v553, %v561
        %v570 = vsel %vm568, %v555, %v563
        %v571 = vsel %vm568, %v557, %v565
        %v572 = vsel %vm568, %v559, %v567
        %v573 = vsel %vm568, %v561, %v553
        %v574 = vsel %vm568, %v563, %v555
        %v575 = vsel %vm568, %v565, %v557
        %v576 = vsel %vm568, %v567, %v559
        %s577 = scalar_lea.vmem %s2, 4
        %v578 = vld [vmem:[%s577] sm:$0x3]
        %v580 = vlaneseq
        %v581 = vshrl.u32 %v580, 7
        %v582 = vsub.s32 0, %v581
        %v583 = vrot.slane %v578, %v582
        %v584 = vlaneseq
        %v585 = vshrl.u32 %v584, 7
        %v586 = vsub.s32 1, %v585
        %v587 = vrot.slane %v578, %v586
        %v590 = vmul.f32 %v573, %v583
        %v591 = vmul.f32 %v569, %v587
        %v592 = vmul.f32 %v574, %v583
        %v593 = vmul.f32 %v570, %v587
        %v594 = vmul.f32 %v575, %v583
        %v595 = vmul.f32 %v571, %v587
        %v596 = vmul.f32 %v576, %v583
        %v597 = vmul.f32 %v572, %v587
        %598 = vrot.lane.b32.xlu0 %v451, 1
        %v599 = vpop.permute.xlu0 %598
        %600 = vrot.lane.b32.xlu0 %v453, 1
        %v601 = vpop.permute.xlu0 %600
        %602 = vrot.lane.b32.xlu0 %v455, 1
        %v603 = vpop.permute.xlu0 %602
        %604 = vrot.lane.b32.xlu0 %v457, 1
        %v605 = vpop.permute.xlu0 %604
        %606 = vrot.lane.b32.xlu0 %v452, 1
        %v607 = vpop.permute.xlu0 %606
        %608 = vrot.lane.b32.xlu0 %v454, 1
        %v609 = vpop.permute.xlu0 %608
        %610 = vrot.lane.b32.xlu0 %v456, 1
        %v611 = vpop.permute.xlu0 %610
        %612 = vrot.lane.b32.xlu0 %v458, 1
        %v613 = vpop.permute.xlu0 %612
        %vm614 = vcmp.lt.s32.totalorder %v476, 1
        %v615 = vsel %vm614, %v599, %v607
        %v616 = vsel %vm614, %v601, %v609
        %v617 = vsel %vm614, %v603, %v611
        %v618 = vsel %vm614, %v605, %v613
        %v619 = vsel %vm614, %v607, %v599
        %v620 = vsel %vm614, %v609, %v601
        %v621 = vsel %vm614, %v611, %v603
        %v622 = vsel %vm614, %v613, %v605
        %s623 = scalar_lea.vmem %s2, 6
        %v624 = vld [vmem:[%s623] sm:$0x3]
        %v626 = vlaneseq
        %v627 = vshrl.u32 %v626, 7
        %v628 = vsub.s32 0, %v627
        %v629 = vrot.slane %v624, %v628
        %v630 = vlaneseq
        %v631 = vshrl.u32 %v630, 7
        %v632 = vsub.s32 1, %v631
        %v633 = vrot.slane %v624, %v632
        %v636 = vmul.f32 %v619, %v629
        %v637 = vmul.f32 %v615, %v633
        %v638 = vmul.f32 %v620, %v629
        %v639 = vmul.f32 %v616, %v633
        %v640 = vmul.f32 %v621, %v629
        %v641 = vmul.f32 %v617, %v633
        %v642 = vmul.f32 %v622, %v629
        %v643 = vmul.f32 %v618, %v633
        %s644 = scalar_lea.vmem %s2, 8
        %v645 = vld [vmem:[%s644] sm:$0x3]
        %v647 = vlaneseq
        %v648 = vshrl.u32 %v647, 7
        %v649 = vsub.s32 0, %v648
        %v650 = vrot.slane %v645, %v649
        %v651 = vlaneseq
        %v652 = vshrl.u32 %v651, 7
        %v653 = vsub.s32 1, %v652
        %v654 = vrot.slane %v645, %v653
        %v657 = vmul.f32 %v451, %v650
        %v658 = vmul.f32 %v452, %v654
        %v659 = vmul.f32 %v453, %v650
        %v660 = vmul.f32 %v454, %v654
        %v661 = vmul.f32 %v455, %v650
        %v662 = vmul.f32 %v456, %v654
        %v663 = vmul.f32 %v457, %v650
        %v664 = vmul.f32 %v458, %v654
        %665 = vrot.lane.b32.xlu0 %v451, 127
        %v666 = vpop.permute.xlu0 %665
        %667 = vrot.lane.b32.xlu0 %v453, 127
        %v668 = vpop.permute.xlu0 %667
        %669 = vrot.lane.b32.xlu0 %v455, 127
        %v670 = vpop.permute.xlu0 %669
        %671 = vrot.lane.b32.xlu0 %v457, 127
        %v672 = vpop.permute.xlu0 %671
        %673 = vrot.lane.b32.xlu0 %v452, 127
        %v674 = vpop.permute.xlu0 %673
        %675 = vrot.lane.b32.xlu0 %v454, 127
        %v676 = vpop.permute.xlu0 %675
        %677 = vrot.lane.b32.xlu0 %v456, 127
        %v678 = vpop.permute.xlu0 %677
        %679 = vrot.lane.b32.xlu0 %v458, 127
        %v680 = vpop.permute.xlu0 %679
        %vm681 = vcmp.lt.s32.totalorder %v476, 127
        %v682 = vsel %vm681, %v666, %v674
        %v683 = vsel %vm681, %v668, %v676
        %v684 = vsel %vm681, %v670, %v678
        %v685 = vsel %vm681, %v672, %v680
        %v686 = vsel %vm681, %v674, %v666
        %v687 = vsel %vm681, %v676, %v668
        %v688 = vsel %vm681, %v678, %v670
        %v689 = vsel %vm681, %v680, %v672
        %s690 = scalar_lea.vmem %s2, 10
        %v691 = vld [vmem:[%s690] sm:$0x3]
        %v693 = vlaneseq
        %v694 = vshrl.u32 %v693, 7
        %v695 = vsub.s32 0, %v694
        %v696 = vrot.slane %v691, %v695
        %v697 = vlaneseq
        %v698 = vshrl.u32 %v697, 7
        %v699 = vsub.s32 1, %v698
        %v700 = vrot.slane %v691, %v699
        %v703 = vmul.f32 %v682, %v696
        %v704 = vmul.f32 %v686, %v700
        %v705 = vmul.f32 %v683, %v696
        %v706 = vmul.f32 %v687, %v700
        %v707 = vmul.f32 %v684, %v696
        %v708 = vmul.f32 %v688, %v700
        %v709 = vmul.f32 %v685, %v696
        %v710 = vmul.f32 %v689, %v700
        %711 = vrot.lane.b32.xlu0 %v451, 113
        %v712 = vpop.permute.xlu0 %711
        %713 = vrot.lane.b32.xlu0 %v453, 113
        %v714 = vpop.permute.xlu0 %713
        %715 = vrot.lane.b32.xlu0 %v455, 113
        %v716 = vpop.permute.xlu0 %715
        %717 = vrot.lane.b32.xlu0 %v457, 113
        %v718 = vpop.permute.xlu0 %717
        %719 = vrot.lane.b32.xlu0 %v452, 113
        %v720 = vpop.permute.xlu0 %719
        %721 = vrot.lane.b32.xlu0 %v454, 113
        %v722 = vpop.permute.xlu0 %721
        %723 = vrot.lane.b32.xlu0 %v456, 113
        %v724 = vpop.permute.xlu0 %723
        %725 = vrot.lane.b32.xlu0 %v458, 113
        %v726 = vpop.permute.xlu0 %725
        %vm727 = vcmp.lt.s32.totalorder %v476, 113
        %v728 = vsel %vm727, %v712, %v720
        %v729 = vsel %vm727, %v714, %v722
        %v730 = vsel %vm727, %v716, %v724
        %v731 = vsel %vm727, %v718, %v726
        %v732 = vsel %vm727, %v720, %v712
        %v733 = vsel %vm727, %v722, %v714
        %v734 = vsel %vm727, %v724, %v716
        %v735 = vsel %vm727, %v726, %v718
        %s736 = scalar_lea.vmem %s2, 12
        %v737 = vld [vmem:[%s736] sm:$0x3]
        %v739 = vlaneseq
        %v740 = vshrl.u32 %v739, 7
        %v741 = vsub.s32 0, %v740
        %v742 = vrot.slane %v737, %v741
        %v743 = vlaneseq
        %v744 = vshrl.u32 %v743, 7
        %v745 = vsub.s32 1, %v744
        %v746 = vrot.slane %v737, %v745
        %v749 = vmul.f32 %v728, %v742
        %v750 = vmul.f32 %v732, %v746
        %v751 = vmul.f32 %v729, %v742
        %v752 = vmul.f32 %v733, %v746
        %v753 = vmul.f32 %v730, %v742
        %v754 = vmul.f32 %v734, %v746
        %v755 = vmul.f32 %v731, %v742
        %v756 = vmul.f32 %v735, %v746
        %757 = vrot.lane.b32.xlu0 %v451, 112
        %v758 = vpop.permute.xlu0 %757
        %759 = vrot.lane.b32.xlu0 %v453, 112
        %v760 = vpop.permute.xlu0 %759
        %761 = vrot.lane.b32.xlu0 %v455, 112
        %v762 = vpop.permute.xlu0 %761
        %763 = vrot.lane.b32.xlu0 %v457, 112
        %v764 = vpop.permute.xlu0 %763
        %765 = vrot.lane.b32.xlu0 %v452, 112
        %v766 = vpop.permute.xlu0 %765
        %767 = vrot.lane.b32.xlu0 %v454, 112
        %v768 = vpop.permute.xlu0 %767
        %769 = vrot.lane.b32.xlu0 %v456, 112
        %v770 = vpop.permute.xlu0 %769
        %771 = vrot.lane.b32.xlu0 %v458, 112
        %v772 = vpop.permute.xlu0 %771
        %vm773 = vcmp.lt.s32.totalorder %v476, 112
        %v774 = vsel %vm773, %v758, %v766
        %v775 = vsel %vm773, %v760, %v768
        %v776 = vsel %vm773, %v762, %v770
        %v777 = vsel %vm773, %v764, %v772
        %v778 = vsel %vm773, %v766, %v758
        %v779 = vsel %vm773, %v768, %v760
        %v780 = vsel %vm773, %v770, %v762
        %v781 = vsel %vm773, %v772, %v764
        %s782 = scalar_lea.vmem %s2, 14
        %v783 = vld [vmem:[%s782] sm:$0x3]
        %v785 = vlaneseq
        %v786 = vshrl.u32 %v785, 7
        %v787 = vsub.s32 0, %v786
        %v788 = vrot.slane %v783, %v787
        %v789 = vlaneseq
        %v790 = vshrl.u32 %v789, 7
        %v791 = vsub.s32 1, %v790
        %v792 = vrot.slane %v783, %v791
        %v795 = vmul.f32 %v774, %v788
        %v796 = vmul.f32 %v778, %v792
        %v797 = vmul.f32 %v775, %v788
        %v798 = vmul.f32 %v779, %v792
        %v799 = vmul.f32 %v776, %v788
        %v800 = vmul.f32 %v780, %v792
        %v801 = vmul.f32 %v777, %v788
        %v802 = vmul.f32 %v781, %v792
        %803 = vrot.lane.b32.xlu0 %v451, 111
        %v804 = vpop.permute.xlu0 %803
        %805 = vrot.lane.b32.xlu0 %v453, 111
        %v806 = vpop.permute.xlu0 %805
        %807 = vrot.lane.b32.xlu0 %v455, 111
        %v808 = vpop.permute.xlu0 %807
        %809 = vrot.lane.b32.xlu0 %v457, 111
        %v810 = vpop.permute.xlu0 %809
        %811 = vrot.lane.b32.xlu0 %v452, 111
        %v812 = vpop.permute.xlu0 %811
        %813 = vrot.lane.b32.xlu0 %v454, 111
        %v814 = vpop.permute.xlu0 %813
        %815 = vrot.lane.b32.xlu0 %v456, 111
        %v816 = vpop.permute.xlu0 %815
        %817 = vrot.lane.b32.xlu0 %v458, 111
        %v818 = vpop.permute.xlu0 %817
        %vm819 = vcmp.lt.s32.totalorder %v476, 111
        %v820 = vsel %vm819, %v804, %v812
        %v821 = vsel %vm819, %v806, %v814
        %v822 = vsel %vm819, %v808, %v816
        %v823 = vsel %vm819, %v810, %v818
        %v824 = vsel %vm819, %v812, %v804
        %v825 = vsel %vm819, %v814, %v806
        %v826 = vsel %vm819, %v816, %v808
        %v827 = vsel %vm819, %v818, %v810
        %s828 = scalar_lea.vmem %s2, 16
        %v829 = vld [vmem:[%s828] sm:$0x3]
        %v831 = vlaneseq
        %v832 = vshrl.u32 %v831, 7
        %v833 = vsub.s32 0, %v832
        %v834 = vrot.slane %v829, %v833
        %v835 = vlaneseq
        %v836 = vshrl.u32 %v835, 7
        %v837 = vsub.s32 1, %v836
        %v838 = vrot.slane %v829, %v837
        %v841 = vmul.f32 %v820, %v834
        %v842 = vmul.f32 %v824, %v838
        %v843 = vmul.f32 %v821, %v834
        %v844 = vmul.f32 %v825, %v838
        %v845 = vmul.f32 %v822, %v834
        %v846 = vmul.f32 %v826, %v838
        %v847 = vmul.f32 %v823, %v834
        %v848 = vmul.f32 %v827, %v838
        %v849 = vld [vmem:[%s7] sm:$0x3f]
        %v850 = vld [vmem:[%s8] sm:$0x3]
        %852 = vset.pattern.permute.xlu0 0
        %853 = vperm.xlu0 %852, %v850
        %v854 = vpop.permute.xlu0 %853
        %v857 = vcombine.high %v849, %v849
        %v859 = vunpack.c.l.s4 1983009808
        %v860 = vunpack.c.0.s8 %v859
        %v861 = vlaneseq
        %v862 = vshrl.u32 %v861, 7
        %v863 = vsub.s32 %v860, %v862
        %v864 = vrot.slane %v849, %v863
        %v866 = vunpack.c.l.s4 1983009808
        %v867 = vunpack.c.0.s8 %v866
        %v868 = vlaneseq
        %v869 = vshrl.u32 %v868, 7
        %v870 = vsub.s32 %v867, %v869
        %v871 = vrot.slane %v857, %v870
        %v872 = vcombine.high %v864, %v864
        %vm875 = vcmask 261120
        %v876 = vsel %vm875, %v871, 0
        %878 = vmatprep.subr.mxu0 %v499
        %879 = vmatpush1.msra.mxu0 %v498
        %880 = vmatprep.subr.mxu0 %v501
        %881 = vmatpush1.msra.mxu0 %v500
        %882 = vmatprep.subr.mxu0 %v503
        %883 = vmatpush1.msra.mxu0 %v502
        %884 = vmatprep.subr.mxu0 %v505
        %885 = vmatpush1.msra.mxu0 %v504
        %886 = vmatprep.subr.mxu0 %v545
        %887 = vmatpush1.msra.mxu0 %v544
        %888 = vmatprep.subr.mxu0 %v547
        %889 = vmatpush1.msra.mxu0 %v546
        %890 = vmatprep.subr.mxu0 %v549
        %891 = vmatpush1.msra.mxu0 %v548
        %892 = vmatprep.subr.mxu0 %v551
        %893 = vmatpush1.msra.mxu0 %v550
        %894 = vmatprep.subr.mxu0 %v591
        %895 = vmatpush1.msra.mxu0 %v590
        %896 = vmatprep.subr.mxu0 %v593
        %897 = vmatpush1.msra.mxu0 %v592
        %898 = vmatprep.subr.mxu0 %v595
        %899 = vmatpush1.msra.mxu0 %v594
        %900 = vmatprep.subr.mxu0 %v597
        %901 = vmatpush1.msra.mxu0 %v596
        %902 = vmatprep.subr.mxu0 %v637
        %903 = vmatpush1.msra.mxu0 %v636
        %904 = vmatprep.subr.mxu0 %v639
        %905 = vmatpush1.msra.mxu0 %v638
        %906 = vmatprep.subr.mxu0 %v641
        %907 = vmatpush1.msra.mxu0 %v640
        %908 = vmatprep.subr.mxu0 %v643
        %909 = vmatpush1.msra.mxu0 %v642
        %910 = vmatprep.subr.mxu0 %v658
        %911 = vmatpush1.msra.mxu0 %v657
        %912 = vmatprep.subr.mxu0 %v660
        %913 = vmatpush1.msra.mxu0 %v659
        %914 = vmatprep.subr.mxu0 %v662
        %915 = vmatpush1.msra.mxu0 %v661
        %916 = vmatprep.subr.mxu0 %v664
        %917 = vmatpush1.msra.mxu0 %v663
        %918 = vmatprep.subr.mxu0 %v704
        %919 = vmatpush1.msra.mxu0 %v703
        %920 = vmatprep.subr.mxu0 %v706
        %921 = vmatpush1.msra.mxu0 %v705
        %922 = vmatprep.subr.mxu0 %v708
        %923 = vmatpush1.msra.mxu0 %v707
        %924 = vmatprep.subr.mxu0 %v710
        %925 = vmatpush1.msra.mxu0 %v709
        %926 = vmatprep.subr.mxu0 %v750
        %927 = vmatpush1.msra.mxu0 %v749
        %928 = vmatprep.subr.mxu0 %v752
        %929 = vmatpush1.msra.mxu0 %v751
        %930 = vmatprep.subr.mxu0 %v754
        %931 = vmatpush1.msra.mxu0 %v753
        %932 = vmatprep.subr.mxu0 %v756
        %933 = vmatpush1.msra.mxu0 %v755
        %934 = vmatprep.subr.mxu0 %v796
        %935 = vmatpush1.msra.mxu0 %v795
        %936 = vmatprep.subr.mxu0 %v798
        %937 = vmatpush1.msra.mxu0 %v797
        %938 = vmatprep.subr.mxu0 %v800
        %939 = vmatpush1.msra.mxu0 %v799
        %940 = vmatprep.subr.mxu0 %v802
        %941 = vmatpush1.msra.mxu0 %v801
        %942 = vmatprep.mubr.f32.mxu0 %v872
        %943 = vmatmul.mubr.f32.gmra.mrb[0].mxu0 %v864
        %v944 = vpop.f32.mrb[0].mxu0
        %v945 = vadd.f32 %v854, %v944
        %v946 = vpop.f32.mrb[0].mxu0
        %v947 = vadd.f32 %v854, %v946
        %948 = vdwg.mxu0
        %949 = vmatprep.subr.mxu0 %v842
        %950 = vmatpush1.msra.mxu0 %v841
        %951 = vmatprep.subr.mxu0 %v844
        %952 = vmatpush1.msra.mxu0 %v843
        %953 = vmatprep.subr.mxu0 %v846
        %954 = vmatpush1.msra.mxu0 %v845
        %955 = vmatprep.subr.mxu0 %v848
        %956 = vmatpush1.msra.mxu0 %v847
        %957 = vmatprep.subr.mxu0 0.0
        %958 = vmatpush1.msra.mxu0 0.0
        %959 = vmatprep.subr.mxu0 0.0
        %960 = vmatpush1.msra.mxu0 0.0
        %961 = vmatprep.subr.mxu0 0.0
        %962 = vmatpush1.msra.mxu0 0.0
        %963 = vmatprep.subr.mxu0 0.0
        %964 = vmatpush1.msra.mxu0 0.0
        %965 = vmatprep.subr.mxu0 0.0
        %966 = vmatpush1.msra.mxu0 0.0
        %967 = vmatprep.subr.mxu0 0.0
        %968 = vmatpush1.msra.mxu0 0.0
        %969 = vmatprep.subr.mxu0 0.0
        %970 = vmatpush1.msra.mxu0 0.0
        %971 = vmatprep.subr.mxu0 0.0
        %972 = vmatpush1.msra.mxu0 0.0
        %973 = vmatprep.subr.mxu0 0.0
        %974 = vmatpush1.msra.mxu0 0.0
        %975 = vmatprep.subr.mxu0 0.0
        %976 = vmatpush1.msra.mxu0 0.0
        %977 = vmatprep.subr.mxu0 0.0
        %978 = vmatpush1.msra.mxu0 0.0
        %979 = vmatprep.subr.mxu0 0.0
        %980 = vmatpush1.msra.mxu0 0.0
        %981 = vmatprep.subr.mxu0 0.0
        %982 = vmatpush1.msra.mxu0 0.0
        %983 = vmatprep.subr.mxu0 0.0
        %984 = vmatpush1.msra.mxu0 0.0
        %985 = vmatprep.subr.mxu0 0.0
        %986 = vmatpush1.msra.mxu0 0.0
        %987 = vmatprep.subr.mxu0 0.0
        %988 = vmatpush1.msra.mxu0 0.0
        %989 = vmatprep.subr.mxu0 0.0
        %990 = vmatpush1.msra.mxu0 0.0
        %991 = vmatprep.subr.mxu0 0.0
        %992 = vmatpush1.msra.mxu0 0.0
        %993 = vmatprep.subr.mxu0 0.0
        %994 = vmatpush1.msra.mxu0 0.0
        %995 = vmatprep.subr.mxu0 0.0
        %996 = vmatpush1.msra.mxu0 0.0
        %997 = vmatprep.subr.mxu0 0.0
        %998 = vmatpush1.msra.mxu0 0.0
        %999 = vmatprep.subr.mxu0 0.0
        %1000 = vmatpush1.msra.mxu0 0.0
        %1001 = vmatprep.subr.mxu0 0.0
        %1002 = vmatpush1.msra.mxu0 0.0
        %1003 = vmatprep.subr.mxu0 0.0
        %1004 = vmatpush1.msra.mxu0 0.0
        %1005 = vmatprep.subr.mxu0 0.0
        %1006 = vmatpush1.msra.mxu0 0.0
        %1007 = vmatprep.subr.mxu0 0.0
        %1008 = vmatpush1.msra.mxu0 0.0
        %1009 = vmatprep.subr.mxu0 0.0
        %1010 = vmatpush1.msra.mxu0 0.0
        %1011 = vmatprep.subr.mxu0 0.0
        %1012 = vmatpush1.msra.mxu0 0.0
        %1013 = vmatprep.mubr.f32.mxu0 0.0
        %1014 = vmatmul.mubr.f32.gmra.mrb[0].mxu0 %v876
        %v1015 = vpop.f32.mrb[0].mxu0
        %v1016 = vadd.f32 %v945, %v1015
        %v1017 = vpop.f32.mrb[0].mxu0
        %v1018 = vadd.f32 %v947, %v1017
        %1019 = vdwg.mxu0
        %vm1020 = vcmp.ge.f32.partialorder %v1016, 0.0
        %vm1021 = vcmp.ge.f32.partialorder %v1018, 0.0
        %v1022 = vmul.f32 %v1016, 0.1
        %v1023 = vmul.f32 %v1018, 0.1
        %v1024 = vsel %vm1020, %v1016, %v1022
        %v1025 = vsel %vm1021, %v1018, %v1023
        %v1026 = vld [vmem:[%s9] sm:$0xff]
        %v1027 = vld [vmem:[%s9 + $0x8] sm:$0xff]
        %v1028 = vld [vmem:[%s9 + $0x10] sm:$0xff]
        %v1029 = vld [vmem:[%s9 + $0x18] sm:$0xff]
        %v1030 = vld [vmem:[%s9 + $0x20] sm:$0xff]
        %v1031 = vld [vmem:[%s9 + $0x28] sm:$0xff]
        %v1032 = vld [vmem:[%s9 + $0x30] sm:$0xff]
        %v1033 = vld [vmem:[%s9 + $0x38] sm:$0xff]
        %v1034 = vld [vmem:[%s9 + $0x40] sm:$0xff]
        %v1035 = vld [vmem:[%s9 + $0x48] sm:$0xff]
        %v1036 = vld [vmem:[%s9 + $0x50] sm:$0xff]
        %v1037 = vld [vmem:[%s9 + $0x58] sm:$0xff]
        %v1038 = vld [vmem:[%s9 + $0x60] sm:$0xff]
        %v1039 = vld [vmem:[%s9 + $0x68] sm:$0xff]
        %v1040 = vld [vmem:[%s9 + $0x70] sm:$0xff]
        %v1041 = vld [vmem:[%s9 + $0x78] sm:$0xff]
        %v1042 = vld [vmem:[%s9 + $0x80] sm:$0xff]
        %v1043 = vld [vmem:[%s9 + $0x88] sm:$0xff]
        %v1044 = vld [vmem:[%s9 + $0x90] sm:$0xff]
        %v1045 = vld [vmem:[%s9 + $0x98] sm:$0xff]
        %v1046 = vld [vmem:[%s9 + $0xa0] sm:$0xff]
        %v1047 = vld [vmem:[%s9 + $0xa8] sm:$0xff]
        %v1048 = vld [vmem:[%s9 + $0xb0] sm:$0xff]
        %v1049 = vld [vmem:[%s9 + $0xb8] sm:$0xff]
        %v1050 = vld [vmem:[%s9 + $0xc0] sm:$0xff]
        %v1051 = vld [vmem:[%s9 + $0xc8] sm:$0xff]
        %v1052 = vld [vmem:[%s9 + $0xd0] sm:$0xff]
        %v1053 = vld [vmem:[%s9 + $0xd8] sm:$0xff]
        %v1054 = vld [vmem:[%s9 + $0xe0] sm:$0xff]
        %v1055 = vld [vmem:[%s9 + $0xe8] sm:$0xff]
        %v1056 = vld [vmem:[%s9 + $0xf0] sm:$0xff]
        %v1057 = vld [vmem:[%s9 + $0xf8] sm:$0xff]
        %v1058 = vld [vmem:[%s9 + $0x100] sm:$0xff]
        %v1059 = vld [vmem:[%s9 + $0x108] sm:$0xff]
        %v1060 = vld [vmem:[%s9 + $0x110] sm:$0xff]
        %v1061 = vld [vmem:[%s9 + $0x118] sm:$0xff]
        %vm1062 = vcmask 15360
        %v1064 = vsel %vm1062, %v1026, 0
        %v1067 = vsel %vm1062, %v1027, 0
        %v1070 = vsel %vm1062, %v1028, 0
        %v1073 = vsel %vm1062, %v1029, 0
        %v1076 = vsel %vm1062, %v1030, 0
        %v1079 = vsel %vm1062, %v1031, 0
        %v1082 = vsel %vm1062, %v1032, 0
        %v1085 = vsel %vm1062, %v1033, 0
        %v1088 = vsel %vm1062, %v1034, 0
        %v1091 = vsel %vm1062, %v1035, 0
        %v1094 = vsel %vm1062, %v1036, 0
        %v1097 = vsel %vm1062, %v1037, 0
        %v1100 = vsel %vm1062, %v1038, 0
        %v1103 = vsel %vm1062, %v1039, 0
        %v1106 = vsel %vm1062, %v1040, 0
        %v1109 = vsel %vm1062, %v1041, 0
        %v1112 = vsel %vm1062, %v1042, 0
        %v1115 = vsel %vm1062, %v1043, 0
        %v1118 = vsel %vm1062, %v1044, 0
        %v1121 = vsel %vm1062, %v1045, 0
        %v1124 = vsel %vm1062, %v1046, 0
        %v1127 = vsel %vm1062, %v1047, 0
        %v1130 = vsel %vm1062, %v1048, 0
        %v1133 = vsel %vm1062, %v1049, 0
        %v1136 = vsel %vm1062, %v1050, 0
        %v1139 = vsel %vm1062, %v1051, 0
        %v1142 = vsel %vm1062, %v1052, 0
        %v1145 = vsel %vm1062, %v1053, 0
        %v1148 = vsel %vm1062, %v1054, 0
        %v1151 = vsel %vm1062, %v1055, 0
        %v1154 = vsel %vm1062, %v1056, 0
        %v1157 = vsel %vm1062, %v1057, 0
        %v1160 = vsel %vm1062, %v1058, 0
        %v1163 = vsel %vm1062, %v1059, 0
        %v1166 = vsel %vm1062, %v1060, 0
        %v1169 = vsel %vm1062, %v1061, 0
        %vm1171 = vcmask 1041408
        %v1173 = vsel %vm1171, %v1024, 0
        %v1176 = vsel %vm1171, %v1025, 0
        %1178 = vmatprep.subr.mxu0 %v1176
        %1179 = vmatpush1.msra.mxu0 %v1173
        %1180 = vmatprep.subr.mxu0 0.0
        %1181 = vmatpush1.msra.mxu0 0.0
        %1182 = vmatprep.subr.mxu0 0.0
        %1183 = vmatpush1.msra.mxu0 0.0
        %1184 = vmatprep.subr.mxu0 0.0
        %1185 = vmatpush1.msra.mxu0 0.0
        %1186 = vmatprep.subr.mxu0 0.0
        %1187 = vmatpush1.msra.mxu0 0.0
        %1188 = vmatprep.subr.mxu0 0.0
        %1189 = vmatpush1.msra.mxu0 0.0
        %1190 = vmatprep.subr.mxu0 0.0
        %1191 = vmatpush1.msra.mxu0 0.0
        %1192 = vmatprep.subr.mxu0 0.0
        %1193 = vmatpush1.msra.mxu0 0.0
        %1194 = vmatprep.subr.mxu0 0.0
        %1195 = vmatpush1.msra.mxu0 0.0
        %1196 = vmatprep.subr.mxu0 0.0
        %1197 = vmatpush1.msra.mxu0 0.0
        %1198 = vmatprep.subr.mxu0 0.0
        %1199 = vmatpush1.msra.mxu0 0.0
        %1200 = vmatprep.subr.mxu0 0.0
        %1201 = vmatpush1.msra.mxu0 0.0
        %1202 = vmatprep.subr.mxu0 0.0
        %1203 = vmatpush1.msra.mxu0 0.0
        %1204 = vmatprep.subr.mxu0 0.0
        %1205 = vmatpush1.msra.mxu0 0.0
        %1206 = vmatprep.subr.mxu0 0.0
        %1207 = vmatpush1.msra.mxu0 0.0
        %1208 = vmatprep.subr.mxu0 0.0
        %1209 = vmatpush1.msra.mxu0 0.0
        %1210 = vmatprep.subr.mxu0 0.0
        %1211 = vmatpush1.msra.mxu0 0.0
        %1212 = vmatprep.subr.mxu0 0.0
        %1213 = vmatpush1.msra.mxu0 0.0
        %1214 = vmatprep.subr.mxu0 0.0
        %1215 = vmatpush1.msra.mxu0 0.0
        %1216 = vmatprep.subr.mxu0 0.0
        %1217 = vmatpush1.msra.mxu0 0.0
        %1218 = vmatprep.subr.mxu0 0.0
        %1219 = vmatpush1.msra.mxu0 0.0
        %1220 = vmatprep.subr.mxu0 0.0
        %1221 = vmatpush1.msra.mxu0 0.0
        %1222 = vmatprep.subr.mxu0 0.0
        %1223 = vmatpush1.msra.mxu0 0.0
        %1224 = vmatprep.subr.mxu0 0.0
        %1225 = vmatpush1.msra.mxu0 0.0
        %1226 = vmatprep.subr.mxu0 0.0
        %1227 = vmatpush1.msra.mxu0 0.0
        %1228 = vmatprep.subr.mxu0 0.0
        %1229 = vmatpush1.msra.mxu0 0.0
        %1230 = vmatprep.subr.mxu0 0.0
        %1231 = vmatpush1.msra.mxu0 0.0
        %1232 = vmatprep.subr.mxu0 0.0
        %1233 = vmatpush1.msra.mxu0 0.0
        %1234 = vmatprep.subr.mxu0 0.0
        %1235 = vmatpush1.msra.mxu0 0.0
        %1236 = vmatprep.subr.mxu0 0.0
        %1237 = vmatpush1.msra.mxu0 0.0
        %1238 = vmatprep.subr.mxu0 0.0
        %1239 = vmatpush1.msra.mxu0 0.0
        %1240 = vmatprep.subr.mxu0 0.0
        %1241 = vmatpush1.msra.mxu0 0.0
        %1242 = vmatprep.mubr.f32.mxu0 0.0
        %1243 = vmatmul.mubr.f32.gmra.mrb[0].mxu0 %v1064
        %v1244 = vpop.f32.mrb[0].mxu0
        %v1245 = vadd.f32 0.0, %v1244
        %v1246 = vpop.f32.mrb[0].mxu0
        %v1247 = vadd.f32 0.0, %v1246
        %1248 = vmatprep.mubr.f32.mxu0 0.0
        %1249 = vmatmul.mubr.f32.gmra.mrb[0].mxu0 %v1067
        %v1250 = vpop.f32.mrb[0].mxu0
        %v1251 = vadd.f32 0.0, %v1250
        %v1252 = vpop.f32.mrb[0].mxu0
        %v1253 = vadd.f32 0.0, %v1252
        %1254 = vmatprep.mubr.f32.mxu0 0.0
        %1255 = vmatmul.mubr.f32.gmra.mrb[0].mxu0 %v1070
        %v1256 = vpop.f32.mrb[0].mxu0
        %v1257 = vadd.f32 0.0, %v1256
        %v1258 = vpop.f32.mrb[0].mxu0
        %v1259 = vadd.f32 0.0, %v1258
        %1260 = vmatprep.mubr.f32.mxu0 0.0
        %1261 = vmatmul.mubr.f32.gmra.mrb[0].mxu0 %v1073
        %v1262 = vpop.f32.mrb[0].mxu0
        %v1263 = vadd.f32 0.0, %v1262
        %v1264 = vpop.f32.mrb[0].mxu0
        %v1265 = vadd.f32 0.0, %v1264
        %1266 = vmatprep.mubr.f32.mxu0 0.0
        %1267 = vmatmul.mubr.f32.gmra.mrb[0].mxu0 %v1076
        %v1268 = vpop.f32.mrb[0].mxu0
        %v1269 = vadd.f32 0.0, %v1268
        %v1270 = vpop.f32.mrb[0].mxu0
        %v1271 = vadd.f32 0.0, %v1270
        %1272 = vmatprep.mubr.f32.mxu0 0.0
        %1273 = vmatmul.mubr.f32.gmra.mrb[0].mxu0 %v1079
        %v1274 = vpop.f32.mrb[0].mxu0
        %v1275 = vadd.f32 0.0, %v1274
        %v1276 = vpop.f32.mrb[0].mxu0
        %v1277 = vadd.f32 0.0, %v1276
        %1278 = vmatprep.mubr.f32.mxu0 0.0
        %1279 = vmatmul.mubr.f32.gmra.mrb[0].mxu0 %v1082
        %v1280 = vpop.f32.mrb[0].mxu0
        %v1281 = vadd.f32 0.0, %v1280
        %v1282 = vpop.f32.mrb[0].mxu0
        %v1283 = vadd.f32 0.0, %v1282
        %1284 = vmatprep.mubr.f32.mxu0 0.0
        %1285 = vmatmul.mubr.f32.gmra.mrb[0].mxu0 %v1085
        %v1286 = vpop.f32.mrb[0].mxu0
        %v1287 = vadd.f32 0.0, %v1286
        %v1288 = vpop.f32.mrb[0].mxu0
        %v1289 = vadd.f32 0.0, %v1288
        %1290 = vmatprep.mubr.f32.mxu0 0.0
        %1291 = vmatmul.mubr.f32.gmra.mrb[0].mxu0 %v1088
        %v1292 = vpop.f32.mrb[0].mxu0
        %v1293 = vadd.f32 0.0, %v1292
        %v1294 = vpop.f32.mrb[0].mxu0
        %v1295 = vadd.f32 0.0, %v1294
        %1296 = vmatprep.mubr.f32.mxu0 0.0
        %1297 = vmatmul.mubr.f32.gmra.mrb[0].mxu0 %v1091
        %v1298 = vpop.f32.mrb[0].mxu0
        %v1299 = vadd.f32 0.0, %v1298
        %v1300 = vpop.f32.mrb[0].mxu0
        %v1301 = vadd.f32 0.0, %v1300
        %1302 = vmatprep.mubr.f32.mxu0 0.0
        %1303 = vmatmul.mubr.f32.gmra.mrb[0].mxu0 %v1094
        %v1304 = vpop.f32.mrb[0].mxu0
        %v1305 = vadd.f32 0.0, %v1304
        %v1306 = vpop.f32.mrb[0].mxu0
        %v1307 = vadd.f32 0.0, %v1306
        %1308 = vmatprep.mubr.f32.mxu0 0.0
        %1309 = vmatmul.mubr.f32.gmra.mrb[0].mxu0 %v1097
        %v1310 = vpop.f32.mrb[0].mxu0
        %v1311 = vadd.f32 0.0, %v1310
        %v1312 = vpop.f32.mrb[0].mxu0
        %v1313 = vadd.f32 0.0, %v1312
        %1314 = vmatprep.mubr.f32.mxu0 0.0
        %1315 = vmatmul.mubr.f32.gmra.mrb[0].mxu0 %v1100
        %v1316 = vpop.f32.mrb[0].mxu0
        %v1317 = vadd.f32 0.0, %v1316
        %v1318 = vpop.f32.mrb[0].mxu0
        %v1319 = vadd.f32 0.0, %v1318
        %1320 = vmatprep.mubr.f32.mxu0 0.0
        %1321 = vmatmul.mubr.f32.gmra.mrb[0].mxu0 %v1103
        %v1322 = vpop.f32.mrb[0].mxu0
        %v1323 = vadd.f32 0.0, %v1322
        %v1324 = vpop.f32.mrb[0].mxu0
        %v1325 = vadd.f32 0.0, %v1324
        %1326 = vmatprep.mubr.f32.mxu0 0.0
        %1327 = vmatmul.mubr.f32.gmra.mrb[0].mxu0 %v1106
        %v1328 = vpop.f32.mrb[0].mxu0
        %v1329 = vadd.f32 0.0, %v1328
        %v1330 = vpop.f32.mrb[0].mxu0
        %v1331 = vadd.f32 0.0, %v1330
        %1332 = vmatprep.mubr.f32.mxu0 0.0
        %1333 = vmatmul.mubr.f32.gmra.mrb[0].mxu0 %v1109
        %v1334 = vpop.f32.mrb[0].mxu0
        %v1335 = vadd.f32 0.0, %v1334
        %v1336 = vpop.f32.mrb[0].mxu0
        %v1337 = vadd.f32 0.0, %v1336
        %1338 = vmatprep.mubr.f32.mxu0 0.0
        %1339 = vmatmul.mubr.f32.gmra.mrb[0].mxu0 %v1112
        %v1340 = vpop.f32.mrb[0].mxu0
        %v1341 = vadd.f32 0.0, %v1340
        %v1342 = vpop.f32.mrb[0].mxu0
        %v1343 = vadd.f32 0.0, %v1342
        %1344 = vmatprep.mubr.f32.mxu0 0.0
        %1345 = vmatmul.mubr.f32.gmra.mrb[0].mxu0 %v1115
        %v1346 = vpop.f32.mrb[0].mxu0
        %v1347 = vadd.f32 0.0, %v1346
        %v1348 = vpop.f32.mrb[0].mxu0
        %v1349 = vadd.f32 0.0, %v1348
        %1350 = vmatprep.mubr.f32.mxu0 0.0
        %1351 = vmatmul.mubr.f32.gmra.mrb[0].mxu0 %v1118
        %v1352 = vpop.f32.mrb[0].mxu0
        %v1353 = vadd.f32 0.0, %v1352
        %v1354 = vpop.f32.mrb[0].mxu0
        %v1355 = vadd.f32 0.0, %v1354
        %1356 = vmatprep.mubr.f32.mxu0 0.0
        %1357 = vmatmul.mubr.f32.gmra.mrb[0].mxu0 %v1121
        %v1358 = vpop.f32.mrb[0].mxu0
        %v1359 = vadd.f32 0.0, %v1358
        %v1360 = vpop.f32.mrb[0].mxu0
        %v1361 = vadd.f32 0.0, %v1360
        %1362 = vmatprep.mubr.f32.mxu0 0.0
        %1363 = vmatmul.mubr.f32.gmra.mrb[0].mxu0 %v1124
        %v1364 = vpop.f32.mrb[0].mxu0
        %v1365 = vadd.f32 0.0, %v1364
        %v1366 = vpop.f32.mrb[0].mxu0
        %v1367 = vadd.f32 0.0, %v1366
        %1368 = vmatprep.mubr.f32.mxu0 0.0
        %1369 = vmatmul.mubr.f32.gmra.mrb[0].mxu0 %v1127
        %v1370 = vpop.f32.mrb[0].mxu0
        %v1371 = vadd.f32 0.0, %v1370
        %v1372 = vpop.f32.mrb[0].mxu0
        %v1373 = vadd.f32 0.0, %v1372
        %1374 = vmatprep.mubr.f32.mxu0 0.0
        %1375 = vmatmul.mubr.f32.gmra.mrb[0].mxu0 %v1130
        %v1376 = vpop.f32.mrb[0].mxu0
        %v1377 = vadd.f32 0.0, %v1376
        %v1378 = vpop.f32.mrb[0].mxu0
        %v1379 = vadd.f32 0.0, %v1378
        %1380 = vmatprep.mubr.f32.mxu0 0.0
        %1381 = vmatmul.mubr.f32.gmra.mrb[0].mxu0 %v1133
        %v1382 = vpop.f32.mrb[0].mxu0
        %v1383 = vadd.f32 0.0, %v1382
        %v1384 = vpop.f32.mrb[0].mxu0
        %v1385 = vadd.f32 0.0, %v1384
        %1386 = vmatprep.mubr.f32.mxu0 0.0
        %1387 = vmatmul.mubr.f32.gmra.mrb[0].mxu0 %v1136
        %v1388 = vpop.f32.mrb[0].mxu0
        %v1389 = vadd.f32 0.0, %v1388
        %v1390 = vpop.f32.mrb[0].mxu0
        %v1391 = vadd.f32 0.0, %v1390
        %1392 = vmatprep.mubr.f32.mxu0 0.0
        %1393 = vmatmul.mubr.f32.gmra.mrb[0].mxu0 %v1139
        %v1394 = vpop.f32.mrb[0].mxu0
        %v1395 = vadd.f32 0.0, %v1394
        %v1396 = vpop.f32.mrb[0].mxu0
        %v1397 = vadd.f32 0.0, %v1396
        %1398 = vmatprep.mubr.f32.mxu0 0.0
        %1399 = vmatmul.mubr.f32.gmra.mrb[0].mxu0 %v1142
        %v1400 = vpop.f32.mrb[0].mxu0
        %v1401 = vadd.f32 0.0, %v1400
        %v1402 = vpop.f32.mrb[0].mxu0
        %v1403 = vadd.f32 0.0, %v1402
        %1404 = vmatprep.mubr.f32.mxu0 0.0
        %1405 = vmatmul.mubr.f32.gmra.mrb[0].mxu0 %v1145
        %v1406 = vpop.f32.mrb[0].mxu0
        %v1407 = vadd.f32 0.0, %v1406
        %v1408 = vpop.f32.mrb[0].mxu0
        %v1409 = vadd.f32 0.0, %v1408
        %1410 = vmatprep.mubr.f32.mxu0 0.0
        %1411 = vmatmul.mubr.f32.gmra.mrb[0].mxu0 %v1148
        %v1412 = vpop.f32.mrb[0].mxu0
        %v1413 = vadd.f32 0.0, %v1412
        %v1414 = vpop.f32.mrb[0].mxu0
        %v1415 = vadd.f32 0.0, %v1414
        %1416 = vmatprep.mubr.f32.mxu0 0.0
        %1417 = vmatmul.mubr.f32.gmra.mrb[0].mxu0 %v1151
        %v1418 = vpop.f32.mrb[0].mxu0
        %v1419 = vadd.f32 0.0, %v1418
        %v1420 = vpop.f32.mrb[0].mxu0
        %v1421 = vadd.f32 0.0, %v1420
        %1422 = vmatprep.mubr.f32.mxu0 0.0
        %1423 = vmatmul.mubr.f32.gmra.mrb[0].mxu0 %v1154
        %v1424 = vpop.f32.mrb[0].mxu0
        %v1425 = vadd.f32 0.0, %v1424
        %v1426 = vpop.f32.mrb[0].mxu0
        %v1427 = vadd.f32 0.0, %v1426
        %1428 = vmatprep.mubr.f32.mxu0 0.0
        %1429 = vmatmul.mubr.f32.gmra.mrb[0].mxu0 %v1157
        %v1430 = vpop.f32.mrb[0].mxu0
        %v1431 = vadd.f32 0.0, %v1430
        %v1432 = vpop.f32.mrb[0].mxu0
        %v1433 = vadd.f32 0.0, %v1432
        %1434 = vmatprep.mubr.f32.mxu0 0.0
        %1435 = vmatmul.mubr.f32.gmra.mrb[0].mxu0 %v1160
        %v1436 = vpop.f32.mrb[0].mxu0
        %v1437 = vadd.f32 0.0, %v1436
        %v1438 = vpop.f32.mrb[0].mxu0
        %v1439 = vadd.f32 0.0, %v1438
        %1440 = vmatprep.mubr.f32.mxu0 0.0
        %1441 = vmatmul.mubr.f32.gmra.mrb[0].mxu0 %v1163
        %v1442 = vpop.f32.mrb[0].mxu0
        %v1443 = vadd.f32 0.0, %v1442
        %v1444 = vpop.f32.mrb[0].mxu0
        %v1445 = vadd.f32 0.0, %v1444
        %1446 = vmatprep.mubr.f32.mxu0 0.0
        %1447 = vmatmul.mubr.f32.gmra.mrb[0].mxu0 %v1166
        %v1448 = vpop.f32.mrb[0].mxu0
        %v1449 = vadd.f32 0.0, %v1448
        %v1450 = vpop.f32.mrb[0].mxu0
        %v1451 = vadd.f32 0.0, %v1450
        %1452 = vmatprep.mubr.f32.mxu0 0.0
        %1453 = vmatmul.mubr.f32.gmra.mrb[0].mxu0 %v1169
        %v1454 = vpop.f32.mrb[0].mxu0
        %v1455 = vadd.f32 0.0, %v1454
        %v1456 = vpop.f32.mrb[0].mxu0
        %v1457 = vadd.f32 0.0, %v1456
        %1458 = vdwg.mxu0
        %v1459 = vld [vmem:[%s10] sm:$0xff]
        %v1460 = vld [vmem:[%s10 + $0x8] sm:$0xff]
        %v1461 = vld [vmem:[%s10 + $0x10] sm:$0xff]
        %v1462 = vld [vmem:[%s10 + $0x18] sm:$0xff]
        %1463 = vrot.lane.b32.xlu0 %v1245, 17
        %v1464 = vpop.permute.xlu0 %1463
        %1465 = vrot.lane.b32.xlu0 %v1251, 17
        %v1466 = vpop.permute.xlu0 %1465
        %1467 = vrot.lane.b32.xlu0 %v1257, 17
        %v1468 = vpop.permute.xlu0 %1467
        %1469 = vrot.lane.b32.xlu0 %v1263, 17
        %v1470 = vpop.permute.xlu0 %1469
        %1471 = vrot.lane.b32.xlu0 %v1247, 17
        %v1472 = vpop.permute.xlu0 %1471
        %1473 = vrot.lane.b32.xlu0 %v1253, 17
        %v1474 = vpop.permute.xlu0 %1473
        %1475 = vrot.lane.b32.xlu0 %v1259, 17
        %v1476 = vpop.permute.xlu0 %1475
        %1477 = vrot.lane.b32.xlu0 %v1265, 17
        %v1478 = vpop.permute.xlu0 %1477
        %v1479 = vsel %vm477, %v1464, %v1472
        %v1480 = vsel %vm477, %v1466, %v1474
        %v1481 = vsel %vm477, %v1468, %v1476
        %v1482 = vsel %vm477, %v1470, %v1478
        %v1483 = vsel %vm477, %v1472, %v1464
        %v1484 = vsel %vm477, %v1474, %v1466
        %v1485 = vsel %vm477, %v1476, %v1468
        %v1486 = vsel %vm477, %v1478, %v1470
        %v1487 = vmul.f32 %v1483, %v491
        %v1488 = vmul.f32 %v1479, %v495
        %v1489 = vmul.f32 %v1484, %v491
        %v1490 = vmul.f32 %v1480, %v495
        %v1491 = vmul.f32 %v1485, %v491
        %v1492 = vmul.f32 %v1481, %v495
        %v1493 = vmul.f32 %v1486, %v491
        %v1494 = vmul.f32 %v1482, %v495
        %1496 = vset.pattern.permute.xlu0 0
        %1497 = vperm.xlu0 %1496, %v1459
        %v1498 = vpop.permute.xlu0 %1497
        %1501 = vset.pattern.permute.xlu0 0
        %1502 = vperm.xlu0 %1501, %v1460
        %v1503 = vpop.permute.xlu0 %1502
        %1506 = vset.pattern.permute.xlu0 0
        %1507 = vperm.xlu0 %1506, %v1461
        %v1508 = vpop.permute.xlu0 %1507
        %1511 = vset.pattern.permute.xlu0 0
        %1512 = vperm.xlu0 %1511, %v1462
        %v1513 = vpop.permute.xlu0 %1512
        %v1515 = vadd.f32 %v1498, %v1487
        %v1516 = vadd.f32 %v1498, %v1488
        %v1517 = vadd.f32 %v1503, %v1489
        %v1518 = vadd.f32 %v1503, %v1490
        %v1519 = vadd.f32 %v1508, %v1491
        %v1520 = vadd.f32 %v1508, %v1492
        %v1521 = vadd.f32 %v1513, %v1493
        %v1522 = vadd.f32 %v1513, %v1494
        %1523 = vrot.lane.b32.xlu0 %v1269, 16
        %v1524 = vpop.permute.xlu0 %1523
        %1525 = vrot.lane.b32.xlu0 %v1275, 16
        %v1526 = vpop.permute.xlu0 %1525
        %1527 = vrot.lane.b32.xlu0 %v1281, 16
        %v1528 = vpop.permute.xlu0 %1527
        %1529 = vrot.lane.b32.xlu0 %v1287, 16
        %v1530 = vpop.permute.xlu0 %1529
        %1531 = vrot.lane.b32.xlu0 %v1271, 16
        %v1532 = vpop.permute.xlu0 %1531
        %1533 = vrot.lane.b32.xlu0 %v1277, 16
        %v1534 = vpop.permute.xlu0 %1533
        %1535 = vrot.lane.b32.xlu0 %v1283, 16
        %v1536 = vpop.permute.xlu0 %1535
        %1537 = vrot.lane.b32.xlu0 %v1289, 16
        %v1538 = vpop.permute.xlu0 %1537
        %v1539 = vsel %vm522, %v1524, %v1532
        %v1540 = vsel %vm522, %v1526, %v1534
        %v1541 = vsel %vm522, %v1528, %v1536
        %v1542 = vsel %vm522, %v1530, %v1538
        %v1543 = vsel %vm522, %v1532, %v1524
        %v1544 = vsel %vm522, %v1534, %v1526
        %v1545 = vsel %vm522, %v1536, %v1528
        %v1546 = vsel %vm522, %v1538, %v1530
        %v1547 = vmul.f32 %v1543, %v537
        %v1548 = vmul.f32 %v1539, %v541
        %v1549 = vmul.f32 %v1544, %v537
        %v1550 = vmul.f32 %v1540, %v541
        %v1551 = vmul.f32 %v1545, %v537
        %v1552 = vmul.f32 %v1541, %v541
        %v1553 = vmul.f32 %v1546, %v537
        %v1554 = vmul.f32 %v1542, %v541
        %v1555 = vadd.f32 %v1515, %v1547
        %v1556 = vadd.f32 %v1516, %v1548
        %v1557 = vadd.f32 %v1517, %v1549
        %v1558 = vadd.f32 %v1518, %v1550
        %v1559 = vadd.f32 %v1519, %v1551
        %v1560 = vadd.f32 %v1520, %v1552
        %v1561 = vadd.f32 %v1521, %v1553
        %v1562 = vadd.f32 %v1522, %v1554
        %1563 = vrot.lane.b32.xlu0 %v1293, 15
        %v1564 = vpop.permute.xlu0 %1563
        %1565 = vrot.lane.b32.xlu0 %v1299, 15
        %v1566 = vpop.permute.xlu0 %1565
        %1567 = vrot.lane.b32.xlu0 %v1305, 15
        %v1568 = vpop.permute.xlu0 %1567
        %1569 = vrot.lane.b32.xlu0 %v1311, 15
        %v1570 = vpop.permute.xlu0 %1569
        %1571 = vrot.lane.b32.xlu0 %v1295, 15
        %v1572 = vpop.permute.xlu0 %1571
        %1573 = vrot.lane.b32.xlu0 %v1301, 15
        %v1574 = vpop.permute.xlu0 %1573
        %1575 = vrot.lane.b32.xlu0 %v1307, 15
        %v1576 = vpop.permute.xlu0 %1575
        %1577 = vrot.lane.b32.xlu0 %v1313, 15
        %v1578 = vpop.permute.xlu0 %1577
        %v1579 = vsel %vm568, %v1564, %v1572
        %v1580 = vsel %vm568, %v1566, %v1574
        %v1581 = vsel %vm568, %v1568, %v1576
        %v1582 = vsel %vm568, %v1570, %v1578
        %v1583 = vsel %vm568, %v1572, %v1564
        %v1584 = vsel %vm568, %v1574, %v1566
        %v1585 = vsel %vm568, %v1576, %v1568
        %v1586 = vsel %vm568, %v1578, %v1570
        %v1587 = vmul.f32 %v1583, %v583
        %v1588 = vmul.f32 %v1579, %v587
        %v1589 = vmul.f32 %v1584, %v583
        %v1590 = vmul.f32 %v1580, %v587
        %v1591 = vmul.f32 %v1585, %v583
        %v1592 = vmul.f32 %v1581, %v587
        %v1593 = vmul.f32 %v1586, %v583
        %v1594 = vmul.f32 %v1582, %v587
        %v1595 = vadd.f32 %v1555, %v1587
        %v1596 = vadd.f32 %v1556, %v1588
        %v1597 = vadd.f32 %v1557, %v1589
        %v1598 = vadd.f32 %v1558, %v1590
        %v1599 = vadd.f32 %v1559, %v1591
        %v1600 = vadd.f32 %v1560, %v1592
        %v1601 = vadd.f32 %v1561, %v1593
        %v1602 = vadd.f32 %v1562, %v1594
        %1603 = vrot.lane.b32.xlu0 %v1317, 1
        %v1604 = vpop.permute.xlu0 %1603
        %1605 = vrot.lane.b32.xlu0 %v1323, 1
        %v1606 = vpop.permute.xlu0 %1605
        %1607 = vrot.lane.b32.xlu0 %v1329, 1
        %v1608 = vpop.permute.xlu0 %1607
        %1609 = vrot.lane.b32.xlu0 %v1335, 1
        %v1610 = vpop.permute.xlu0 %1609
        %1611 = vrot.lane.b32.xlu0 %v1319, 1
        %v1612 = vpop.permute.xlu0 %1611
        %1613 = vrot.lane.b32.xlu0 %v1325, 1
        %v1614 = vpop.permute.xlu0 %1613
        %1615 = vrot.lane.b32.xlu0 %v1331, 1
        %v1616 = vpop.permute.xlu0 %1615
        %1617 = vrot.lane.b32.xlu0 %v1337, 1
        %v1618 = vpop.permute.xlu0 %1617
        %v1619 = vsel %vm614, %v1604, %v1612
        %v1620 = vsel %vm614, %v1606, %v1614
        %v1621 = vsel %vm614, %v1608, %v1616
        %v1622 = vsel %vm614, %v1610, %v1618
        %v1623 = vsel %vm614, %v1612, %v1604
        %v1624 = vsel %vm614, %v1614, %v1606
        %v1625 = vsel %vm614, %v1616, %v1608
        %v1626 = vsel %vm614, %v1618, %v1610
        %v1627 = vmul.f32 %v1623, %v629
        %v1628 = vmul.f32 %v1619, %v633
        %v1629 = vmul.f32 %v1624, %v629
        %v1630 = vmul.f32 %v1620, %v633
        %v1631 = vmul.f32 %v1625, %v629
        %v1632 = vmul.f32 %v1621, %v633
        %v1633 = vmul.f32 %v1626, %v629
        %v1634 = vmul.f32 %v1622, %v633
        %v1635 = vadd.f32 %v1595, %v1627
        %v1636 = vadd.f32 %v1596, %v1628
        %v1637 = vadd.f32 %v1597, %v1629
        %v1638 = vadd.f32 %v1598, %v1630
        %v1639 = vadd.f32 %v1599, %v1631
        %v1640 = vadd.f32 %v1600, %v1632
        %v1641 = vadd.f32 %v1601, %v1633
        %v1642 = vadd.f32 %v1602, %v1634
        %v1643 = vmul.f32 %v1341, %v650
        %v1644 = vmul.f32 %v1343, %v654
        %v1645 = vmul.f32 %v1347, %v650
        %v1646 = vmul.f32 %v1349, %v654
        %v1647 = vmul.f32 %v1353, %v650
        %v1648 = vmul.f32 %v1355, %v654
        %v1649 = vmul.f32 %v1359, %v650
        %v1650 = vmul.f32 %v1361, %v654
        %v1651 = vadd.f32 %v1635, %v1643
        %v1652 = vadd.f32 %v1636, %v1644
        %v1653 = vadd.f32 %v1637, %v1645
        %v1654 = vadd.f32 %v1638, %v1646
        %v1655 = vadd.f32 %v1639, %v1647
        %v1656 = vadd.f32 %v1640, %v1648
        %v1657 = vadd.f32 %v1641, %v1649
        %v1658 = vadd.f32 %v1642, %v1650
        %1659 = vrot.lane.b32.xlu0 %v1365, 127
        %v1660 = vpop.permute.xlu0 %1659
        %1661 = vrot.lane.b32.xlu0 %v1371, 127
        %v1662 = vpop.permute.xlu0 %1661
        %1663 = vrot.lane.b32.xlu0 %v1377, 127
        %v1664 = vpop.permute.xlu0 %1663
        %1665 = vrot.lane.b32.xlu0 %v1383, 127
        %v1666 = vpop.permute.xlu0 %1665
        %1667 = vrot.lane.b32.xlu0 %v1367, 127
        %v1668 = vpop.permute.xlu0 %1667
        %1669 = vrot.lane.b32.xlu0 %v1373, 127
        %v1670 = vpop.permute.xlu0 %1669
        %1671 = vrot.lane.b32.xlu0 %v1379, 127
        %v1672 = vpop.permute.xlu0 %1671
        %1673 = vrot.lane.b32.xlu0 %v1385, 127
        %v1674 = vpop.permute.xlu0 %1673
        %v1675 = vsel %vm681, %v1660, %v1668
        %v1676 = vsel %vm681, %v1662, %v1670
        %v1677 = vsel %vm681, %v1664, %v1672
        %v1678 = vsel %vm681, %v1666, %v1674
        %v1679 = vsel %vm681, %v1668, %v1660
        %v1680 = vsel %vm681, %v1670, %v1662
        %v1681 = vsel %vm681, %v1672, %v1664
        %v1682 = vsel %vm681, %v1674, %v1666
        %v1683 = vmul.f32 %v1675, %v696
        %v1684 = vmul.f32 %v1679, %v700
        %v1685 = vmul.f32 %v1676, %v696
        %v1686 = vmul.f32 %v1680, %v700
        %v1687 = vmul.f32 %v1677, %v696
        %v1688 = vmul.f32 %v1681, %v700
        %v1689 = vmul.f32 %v1678, %v696
        %v1690 = vmul.f32 %v1682, %v700
        %v1691 = vadd.f32 %v1651, %v1683
        %v1692 = vadd.f32 %v1652, %v1684
        %v1693 = vadd.f32 %v1653, %v1685
        %v1694 = vadd.f32 %v1654, %v1686
        %v1695 = vadd.f32 %v1655, %v1687
        %v1696 = vadd.f32 %v1656, %v1688
        %v1697 = vadd.f32 %v1657, %v1689
        %v1698 = vadd.f32 %v1658, %v1690
        %1699 = vrot.lane.b32.xlu0 %v1389, 113
        %v1700 = vpop.permute.xlu0 %1699
        %1701 = vrot.lane.b32.xlu0 %v1395, 113
        %v1702 = vpop.permute.xlu0 %1701
        %1703 = vrot.lane.b32.xlu0 %v1401, 113
        %v1704 = vpop.permute.xlu0 %1703
        %1705 = vrot.lane.b32.xlu0 %v1407, 113
        %v1706 = vpop.permute.xlu0 %1705
        %1707 = vrot.lane.b32.xlu0 %v1391, 113
        %v1708 = vpop.permute.xlu0 %1707
        %1709 = vrot.lane.b32.xlu0 %v1397, 113
        %v1710 = vpop.permute.xlu0 %1709
        %1711 = vrot.lane.b32.xlu0 %v1403, 113
        %v1712 = vpop.permute.xlu0 %1711
        %1713 = vrot.lane.b32.xlu0 %v1409, 113
        %v1714 = vpop.permute.xlu0 %1713
        %v1715 = vsel %vm727, %v1700, %v1708
        %v1716 = vsel %vm727, %v1702, %v1710
        %v1717 = vsel %vm727, %v1704, %v1712
        %v1718 = vsel %vm727, %v1706, %v1714
        %v1719 = vsel %vm727, %v1708, %v1700
        %v1720 = vsel %vm727, %v1710, %v1702
        %v1721 = vsel %vm727, %v1712, %v1704
        %v1722 = vsel %vm727, %v1714, %v1706
        %v1723 = vmul.f32 %v1715, %v742
        %v1724 = vmul.f32 %v1719, %v746
        %v1725 = vmul.f32 %v1716, %v742
        %v1726 = vmul.f32 %v1720, %v746
        %v1727 = vmul.f32 %v1717, %v742
        %v1728 = vmul.f32 %v1721, %v746
        %v1729 = vmul.f32 %v1718, %v742
        %v1730 = vmul.f32 %v1722, %v746
        %v1731 = vadd.f32 %v1691, %v1723
        %v1732 = vadd.f32 %v1692, %v1724
        %v1733 = vadd.f32 %v1693, %v1725
        %v1734 = vadd.f32 %v1694, %v1726
        %v1735 = vadd.f32 %v1695, %v1727
        %v1736 = vadd.f32 %v1696, %v1728
        %v1737 = vadd.f32 %v1697, %v1729
        %v1738 = vadd.f32 %v1698, %v1730
        %1739 = vrot.lane.b32.xlu0 %v1413, 112
        %v1740 = vpop.permute.xlu0 %1739
        %1741 = vrot.lane.b32.xlu0 %v1419, 112
        %v1742 = vpop.permute.xlu0 %1741
        %1743 = vrot.lane.b32.xlu0 %v1425, 112
        %v1744 = vpop.permute.xlu0 %1743
        %1745 = vrot.lane.b32.xlu0 %v1431, 112
        %v1746 = vpop.permute.xlu0 %1745
        %1747 = vrot.lane.b32.xlu0 %v1415, 112
        %v1748 = vpop.permute.xlu0 %1747
        %1749 = vrot.lane.b32.xlu0 %v1421, 112
        %v1750 = vpop.permute.xlu0 %1749
        %1751 = vrot.lane.b32.xlu0 %v1427, 112
        %v1752 = vpop.permute.xlu0 %1751
        %1753 = vrot.lane.b32.xlu0 %v1433, 112
        %v1754 = vpop.permute.xlu0 %1753
        %v1755 = vsel %vm773, %v1740, %v1748
        %v1756 = vsel %vm773, %v1742, %v1750
        %v1757 = vsel %vm773, %v1744, %v1752
        %v1758 = vsel %vm773, %v1746, %v1754
        %v1759 = vsel %vm773, %v1748, %v1740
        %v1760 = vsel %vm773, %v1750, %v1742
        %v1761 = vsel %vm773, %v1752, %v1744
        %v1762 = vsel %vm773, %v1754, %v1746
        %v1763 = vmul.f32 %v1755, %v788
        %v1764 = vmul.f32 %v1759, %v792
        %v1765 = vmul.f32 %v1756, %v788
        %v1766 = vmul.f32 %v1760, %v792
        %v1767 = vmul.f32 %v1757, %v788
        %v1768 = vmul.f32 %v1761, %v792
        %v1769 = vmul.f32 %v1758, %v788
        %v1770 = vmul.f32 %v1762, %v792
        %v1771 = vadd.f32 %v1731, %v1763
        %v1772 = vadd.f32 %v1732, %v1764
        %v1773 = vadd.f32 %v1733, %v1765
        %v1774 = vadd.f32 %v1734, %v1766
        %v1775 = vadd.f32 %v1735, %v1767
        %v1776 = vadd.f32 %v1736, %v1768
        %v1777 = vadd.f32 %v1737, %v1769
        %v1778 = vadd.f32 %v1738, %v1770
        %1779 = vrot.lane.b32.xlu0 %v1437, 111
        %v1780 = vpop.permute.xlu0 %1779
        %1781 = vrot.lane.b32.xlu0 %v1443, 111
        %v1782 = vpop.permute.xlu0 %1781
        %1783 = vrot.lane.b32.xlu0 %v1449, 111
        %v1784 = vpop.permute.xlu0 %1783
        %1785 = vrot.lane.b32.xlu0 %v1455, 111
        %v1786 = vpop.permute.xlu0 %1785
        %1787 = vrot.lane.b32.xlu0 %v1439, 111
        %v1788 = vpop.permute.xlu0 %1787
        %1789 = vrot.lane.b32.xlu0 %v1445, 111
        %v1790 = vpop.permute.xlu0 %1789
        %1791 = vrot.lane.b32.xlu0 %v1451, 111
        %v1792 = vpop.permute.xlu0 %1791
        %1793 = vrot.lane.b32.xlu0 %v1457, 111
        %v1794 = vpop.permute.xlu0 %1793
        %v1795 = vsel %vm819, %v1780, %v1788
        %v1796 = vsel %vm819, %v1782, %v1790
        %v1797 = vsel %vm819, %v1784, %v1792
        %v1798 = vsel %vm819, %v1786, %v1794
        %v1799 = vsel %vm819, %v1788, %v1780
        %v1800 = vsel %vm819, %v1790, %v1782
        %v1801 = vsel %vm819, %v1792, %v1784
        %v1802 = vsel %vm819, %v1794, %v1786
        %v1803 = vmul.f32 %v1795, %v834
        %v1804 = vmul.f32 %v1799, %v838
        %v1805 = vmul.f32 %v1796, %v834
        %v1806 = vmul.f32 %v1800, %v838
        %v1807 = vmul.f32 %v1797, %v834
        %v1808 = vmul.f32 %v1801, %v838
        %v1809 = vmul.f32 %v1798, %v834
        %v1810 = vmul.f32 %v1802, %v838
        %v1811 = vadd.f32 %v1771, %v1803
        %v1812 = vadd.f32 %v1772, %v1804
        %v1813 = vadd.f32 %v1773, %v1805
        %v1814 = vadd.f32 %v1774, %v1806
        %v1815 = vadd.f32 %v1775, %v1807
        %v1816 = vadd.f32 %v1776, %v1808
        %v1817 = vadd.f32 %v1777, %v1809
        %v1818 = vadd.f32 %v1778, %v1810
        %v1819 = vld [vmem:[%s3] sm:$0x3]
        %v1820 = vld [vmem:[%s4] sm:$0x3]
        %1822 = vset.pattern.permute.xlu0 0
        %1823 = vperm.xlu0 %1822, %v1820
        %v1824 = vpop.permute.xlu0 %1823
        %v1827 = vsel %vm875, %v1819, 0
        %1829 = vmatprep.subr.mxu0 %v444
        %1830 = vmatpush1.msra.mxu0 %v443
        %1831 = vmatprep.subr.mxu0 %v446
        %1832 = vmatpush1.msra.mxu0 %v445
        %1833 = vmatprep.subr.mxu0 %v448
        %1834 = vmatpush1.msra.mxu0 %v447
        %1835 = vmatprep.subr.mxu0 %v450
        %1836 = vmatpush1.msra.mxu0 %v449
        %1837 = vmatprep.subr.mxu0 0.0
        %1838 = vmatpush1.msra.mxu0 0.0
        %1839 = vmatprep.subr.mxu0 0.0
        %1840 = vmatpush1.msra.mxu0 0.0
        %1841 = vmatprep.subr.mxu0 0.0
        %1842 = vmatpush1.msra.mxu0 0.0
        %1843 = vmatprep.subr.mxu0 0.0
        %1844 = vmatpush1.msra.mxu0 0.0
        %1845 = vmatprep.subr.mxu0 0.0
        %1846 = vmatpush1.msra.mxu0 0.0
        %1847 = vmatprep.subr.mxu0 0.0
        %1848 = vmatpush1.msra.mxu0 0.0
        %1849 = vmatprep.subr.mxu0 0.0
        %1850 = vmatpush1.msra.mxu0 0.0
        %1851 = vmatprep.subr.mxu0 0.0
        %1852 = vmatpush1.msra.mxu0 0.0
        %1853 = vmatprep.subr.mxu0 0.0
        %1854 = vmatpush1.msra.mxu0 0.0
        %1855 = vmatprep.subr.mxu0 0.0
        %1856 = vmatpush1.msra.mxu0 0.0
        %1857 = vmatprep.subr.mxu0 0.0
        %1858 = vmatpush1.msra.mxu0 0.0
        %1859 = vmatprep.subr.mxu0 0.0
        %1860 = vmatpush1.msra.mxu0 0.0
        %1861 = vmatprep.subr.mxu0 0.0
        %1862 = vmatpush1.msra.mxu0 0.0
        %1863 = vmatprep.subr.mxu0 0.0
        %1864 = vmatpush1.msra.mxu0 0.0
        %1865 = vmatprep.subr.mxu0 0.0
        %1866 = vmatpush1.msra.mxu0 0.0
        %1867 = vmatprep.subr.mxu0 0.0
        %1868 = vmatpush1.msra.mxu0 0.0
        %1869 = vmatprep.subr.mxu0 0.0
        %1870 = vmatpush1.msra.mxu0 0.0
        %1871 = vmatprep.subr.mxu0 0.0
        %1872 = vmatpush1.msra.mxu0 0.0
        %1873 = vmatprep.subr.mxu0 0.0
        %1874 = vmatpush1.msra.mxu0 0.0
        %1875 = vmatprep.subr.mxu0 0.0
        %1876 = vmatpush1.msra.mxu0 0.0
        %1877 = vmatprep.subr.mxu0 0.0
        %1878 = vmatpush1.msra.mxu0 0.0
        %1879 = vmatprep.subr.mxu0 0.0
        %1880 = vmatpush1.msra.mxu0 0.0
        %1881 = vmatprep.subr.mxu0 0.0
        %1882 = vmatpush1.msra.mxu0 0.0
        %1883 = vmatprep.subr.mxu0 0.0
        %1884 = vmatpush1.msra.mxu0 0.0
        %1885 = vmatprep.subr.mxu0 0.0
        %1886 = vmatpush1.msra.mxu0 0.0
        %1887 = vmatprep.subr.mxu0 0.0
        %1888 = vmatpush1.msra.mxu0 0.0
        %1889 = vmatprep.subr.mxu0 0.0
        %1890 = vmatpush1.msra.mxu0 0.0
        %1891 = vmatprep.subr.mxu0 0.0
        %1892 = vmatpush1.msra.mxu0 0.0
        %1893 = vmatprep.mubr.f32.mxu0 0.0
        %1894 = vmatmul.mubr.f32.gmra.mrb[0].mxu0 %v1827
        %v1895 = vpop.f32.mrb[0].mxu0
        %v1896 = vadd.f32 %v1824, %v1895
        %v1897 = vpop.f32.mrb[0].mxu0
        %v1898 = vadd.f32 %v1824, %v1897
        %1899 = vdwg.mxu0
        %1900 = vmatprep.subr.mxu0 %v452
        %1901 = vmatpush1.msra.mxu0 %v451
        %1902 = vmatprep.subr.mxu0 %v454
        %1903 = vmatpush1.msra.mxu0 %v453
        %1904 = vmatprep.subr.mxu0 %v456
        %1905 = vmatpush1.msra.mxu0 %v455
        %1906 = vmatprep.subr.mxu0 %v458
        %1907 = vmatpush1.msra.mxu0 %v457
        %1908 = vmatprep.subr.mxu0 0.0
        %1909 = vmatpush1.msra.mxu0 0.0
        %1910 = vmatprep.subr.mxu0 0.0
        %1911 = vmatpush1.msra.mxu0 0.0
        %1912 = vmatprep.subr.mxu0 0.0
        %1913 = vmatpush1.msra.mxu0 0.0
        %1914 = vmatprep.subr.mxu0 0.0
        %1915 = vmatpush1.msra.mxu0 0.0
        %1916 = vmatprep.subr.mxu0 0.0
        %1917 = vmatpush1.msra.mxu0 0.0
        %1918 = vmatprep.subr.mxu0 0.0
        %1919 = vmatpush1.msra.mxu0 0.0
        %1920 = vmatprep.subr.mxu0 0.0
        %1921 = vmatpush1.msra.mxu0 0.0
        %1922 = vmatprep.subr.mxu0 0.0
        %1923 = vmatpush1.msra.mxu0 0.0
        %1924 = vmatprep.subr.mxu0 0.0
        %1925 = vmatpush1.msra.mxu0 0.0
        %1926 = vmatprep.subr.mxu0 0.0
        %1927 = vmatpush1.msra.mxu0 0.0
        %1928 = vmatprep.subr.mxu0 0.0
        %1929 = vmatpush1.msra.mxu0 0.0
        %1930 = vmatprep.subr.mxu0 0.0
        %1931 = vmatpush1.msra.mxu0 0.0
        %1932 = vmatprep.subr.mxu0 0.0
        %1933 = vmatpush1.msra.mxu0 0.0
        %1934 = vmatprep.subr.mxu0 0.0
        %1935 = vmatpush1.msra.mxu0 0.0
        %1936 = vmatprep.subr.mxu0 0.0
        %1937 = vmatpush1.msra.mxu0 0.0
        %1938 = vmatprep.subr.mxu0 0.0
        %1939 = vmatpush1.msra.mxu0 0.0
        %1940 = vmatprep.subr.mxu0 0.0
        %1941 = vmatpush1.msra.mxu0 0.0
        %1942 = vmatprep.subr.mxu0 0.0
        %1943 = vmatpush1.msra.mxu0 0.0
        %1944 = vmatprep.subr.mxu0 0.0
        %1945 = vmatpush1.msra.mxu0 0.0
        %1946 = vmatprep.subr.mxu0 0.0
        %1947 = vmatpush1.msra.mxu0 0.0
        %1948 = vmatprep.subr.mxu0 0.0
        %1949 = vmatpush1.msra.mxu0 0.0
        %1950 = vmatprep.subr.mxu0 0.0
        %1951 = vmatpush1.msra.mxu0 0.0
        %1952 = vmatprep.subr.mxu0 0.0
        %1953 = vmatpush1.msra.mxu0 0.0
        %1954 = vmatprep.subr.mxu0 0.0
        %1955 = vmatpush1.msra.mxu0 0.0
        %1956 = vmatprep.subr.mxu0 0.0
        %1957 = vmatpush1.msra.mxu0 0.0
        %1958 = vmatprep.subr.mxu0 0.0
        %1959 = vmatpush1.msra.mxu0 0.0
        %1960 = vmatprep.subr.mxu0 0.0
        %1961 = vmatpush1.msra.mxu0 0.0
        %1962 = vmatprep.subr.mxu0 0.0
        %1963 = vmatpush1.msra.mxu0 0.0
        %1964 = vmatprep.mubr.f32.mxu0 0.0
        %1965 = vmatmul.mubr.f32.gmra.mrb[0].mxu0 %v1827
        %v1966 = vpop.f32.mrb[0].mxu0
        %v1967 = vadd.f32 %v1824, %v1966
        %v1968 = vpop.f32.mrb[0].mxu0
        %v1969 = vadd.f32 %v1824, %v1968
        %1970 = vdwg.mxu0
        %vm1971 = vcmp.ge.f32.partialorder %v1896, 0.0
        %vm1972 = vcmp.ge.f32.partialorder %v1898, 0.0
        %vm1973 = vcmp.ge.f32.partialorder %v1967, 0.0
        %vm1974 = vcmp.ge.f32.partialorder %v1969, 0.0
        %v1975 = vmul.f32 %v1896, 0.1
        %v1976 = vmul.f32 %v1898, 0.1
        %v1977 = vmul.f32 %v1967, 0.1
        %v1978 = vmul.f32 %v1969, 0.1
        %v1979 = vsel %vm1971, %v1896, %v1975
        %v1980 = vsel %vm1972, %v1898, %v1976
        %v1981 = vsel %vm1973, %v1967, %v1977
        %v1982 = vsel %vm1974, %v1969, %v1978
        %v1983 = vld [vmem:[%s5] sm:$0xff]
        %v1984 = vld [vmem:[%s5 + $0x8] sm:$0xff]
        %v1985 = vld [vmem:[%s5 + $0x10] sm:$0xff]
        %v1986 = vld [vmem:[%s5 + $0x18] sm:$0xff]
        %v1987 = vld [vmem:[%s6] sm:$0xff]
        %v1988 = vld [vmem:[%s6 + $0x8] sm:$0xff]
        %v1989 = vld [vmem:[%s6 + $0x10] sm:$0xff]
        %v1990 = vld [vmem:[%s6 + $0x18] sm:$0xff]
        %1992 = vset.pattern.permute.xlu0 0
        %1993 = vperm.xlu0 %1992, %v1987
        %v1994 = vpop.permute.xlu0 %1993
        %1997 = vset.pattern.permute.xlu0 0
        %1998 = vperm.xlu0 %1997, %v1988
        %v1999 = vpop.permute.xlu0 %1998
        %2002 = vset.pattern.permute.xlu0 0
        %2003 = vperm.xlu0 %2002, %v1989
        %v2004 = vpop.permute.xlu0 %2003
        %2007 = vset.pattern.permute.xlu0 0
        %2008 = vperm.xlu0 %2007, %v1990
        %v2009 = vpop.permute.xlu0 %2008
        %v2012 = vsel %vm1062, %v1983, 0
        %v2015 = vsel %vm1062, %v1984, 0
        %v2018 = vsel %vm1062, %v1985, 0
        %v2021 = vsel %vm1062, %v1986, 0
        %v2024 = vsel %vm1171, %v1979, 0
        %v2027 = vsel %vm1171, %v1980, 0
        %v2030 = vsel %vm1171, %v1981, 0
        %v2033 = vsel %vm1171, %v1982, 0
        %2035 = vmatprep.subr.mxu0 %v2027
        %2036 = vmatpush1.msra.mxu0 %v2024
        %2037 = vmatprep.subr.mxu0 0.0
        %2038 = vmatpush1.msra.mxu0 0.0
        %2039 = vmatprep.subr.mxu0 0.0
        %2040 = vmatpush1.msra.mxu0 0.0
        %2041 = vmatprep.subr.mxu0 0.0
        %2042 = vmatpush1.msra.mxu0 0.0
        %2043 = vmatprep.subr.mxu0 0.0
        %2044 = vmatpush1.msra.mxu0 0.0
        %2045 = vmatprep.subr.mxu0 0.0
        %2046 = vmatpush1.msra.mxu0 0.0
        %2047 = vmatprep.subr.mxu0 0.0
        %2048 = vmatpush1.msra.mxu0 0.0
        %2049 = vmatprep.subr.mxu0 0.0
        %2050 = vmatpush1.msra.mxu0 0.0
        %2051 = vmatprep.subr.mxu0 0.0
        %2052 = vmatpush1.msra.mxu0 0.0
        %2053 = vmatprep.subr.mxu0 0.0
        %2054 = vmatpush1.msra.mxu0 0.0
        %2055 = vmatprep.subr.mxu0 0.0
        %2056 = vmatpush1.msra.mxu0 0.0
        %2057 = vmatprep.subr.mxu0 0.0
        %2058 = vmatpush1.msra.mxu0 0.0
        %2059 = vmatprep.subr.mxu0 0.0
        %2060 = vmatpush1.msra.mxu0 0.0
        %2061 = vmatprep.subr.mxu0 0.0
        %2062 = vmatpush1.msra.mxu0 0.0
        %2063 = vmatprep.subr.mxu0 0.0
        %2064 = vmatpush1.msra.mxu0 0.0
        %2065 = vmatprep.subr.mxu0 0.0
        %2066 = vmatpush1.msra.mxu0 0.0
        %2067 = vmatprep.subr.mxu0 0.0
        %2068 = vmatpush1.msra.mxu0 0.0
        %2069 = vmatprep.subr.mxu0 0.0
        %2070 = vmatpush1.msra.mxu0 0.0
        %2071 = vmatprep.subr.mxu0 0.0
        %2072 = vmatpush1.msra.mxu0 0.0
        %2073 = vmatprep.subr.mxu0 0.0
        %2074 = vmatpush1.msra.mxu0 0.0
        %2075 = vmatprep.subr.mxu0 0.0
        %2076 = vmatpush1.msra.mxu0 0.0
        %2077 = vmatprep.subr.mxu0 0.0
        %2078 = vmatpush1.msra.mxu0 0.0
        %2079 = vmatprep.subr.mxu0 0.0
        %2080 = vmatpush1.msra.mxu0 0.0
        %2081 = vmatprep.subr.mxu0 0.0
        %2082 = vmatpush1.msra.mxu0 0.0
        %2083 = vmatprep.subr.mxu0 0.0
        %2084 = vmatpush1.msra.mxu0 0.0
        %2085 = vmatprep.subr.mxu0 0.0
        %2086 = vmatpush1.msra.mxu0 0.0
        %2087 = vmatprep.subr.mxu0 0.0
        %2088 = vmatpush1.msra.mxu0 0.0
        %2089 = vmatprep.subr.mxu0 0.0
        %2090 = vmatpush1.msra.mxu0 0.0
        %2091 = vmatprep.subr.mxu0 0.0
        %2092 = vmatpush1.msra.mxu0 0.0
        %2093 = vmatprep.subr.mxu0 0.0
        %2094 = vmatpush1.msra.mxu0 0.0
        %2095 = vmatprep.subr.mxu0 0.0
        %2096 = vmatpush1.msra.mxu0 0.0
        %2097 = vmatprep.subr.mxu0 0.0
        %2098 = vmatpush1.msra.mxu0 0.0
        %2099 = vmatprep.mubr.f32.mxu0 0.0
        %2100 = vmatmul.mubr.f32.gmra.mrb[0].mxu0 %v2012
        %v2101 = vpop.f32.mrb[0].mxu0
        %v2102 = vadd.f32 %v1994, %v2101
        %v2103 = vpop.f32.mrb[0].mxu0
        %v2104 = vadd.f32 %v1994, %v2103
        %2105 = vmatprep.mubr.f32.mxu0 0.0
        %2106 = vmatmul.mubr.f32.gmra.mrb[0].mxu0 %v2015
        %v2107 = vpop.f32.mrb[0].mxu0
        %v2108 = vadd.f32 %v1999, %v2107
        %v2109 = vpop.f32.mrb[0].mxu0
        %v2110 = vadd.f32 %v1999, %v2109
        %2111 = vmatprep.mubr.f32.mxu0 0.0
        %2112 = vmatmul.mubr.f32.gmra.mrb[0].mxu0 %v2018
        %v2113 = vpop.f32.mrb[0].mxu0
        %v2114 = vadd.f32 %v2004, %v2113
        %v2115 = vpop.f32.mrb[0].mxu0
        %v2116 = vadd.f32 %v2004, %v2115
        %2117 = vmatprep.mubr.f32.mxu0 0.0
        %2118 = vmatmul.mubr.f32.gmra.mrb[0].mxu0 %v2021
        %v2119 = vpop.f32.mrb[0].mxu0
        %v2120 = vadd.f32 %v2009, %v2119
        %v2121 = vpop.f32.mrb[0].mxu0
        %v2122 = vadd.f32 %v2009, %v2121
        %2123 = vdwg.mxu0
        %2124 = vmatprep.subr.mxu0 %v2033
        %2125 = vmatpush1.msra.mxu0 %v2030
        %2126 = vmatprep.subr.mxu0 0.0
        %2127 = vmatpush1.msra.mxu0 0.0
        %2128 = vmatprep.subr.mxu0 0.0
        %2129 = vmatpush1.msra.mxu0 0.0
        %2130 = vmatprep.subr.mxu0 0.0
        %2131 = vmatpush1.msra.mxu0 0.0
        %2132 = vmatprep.subr.mxu0 0.0
        %2133 = vmatpush1.msra.mxu0 0.0
        %2134 = vmatprep.subr.mxu0 0.0
        %2135 = vmatpush1.msra.mxu0 0.0
        %2136 = vmatprep.subr.mxu0 0.0
        %2137 = vmatpush1.msra.mxu0 0.0
        %2138 = vmatprep.subr.mxu0 0.0
        %2139 = vmatpush1.msra.mxu0 0.0
        %2140 = vmatprep.subr.mxu0 0.0
        %2141 = vmatpush1.msra.mxu0 0.0
        %2142 = vmatprep.subr.mxu0 0.0
        %2143 = vmatpush1.msra.mxu0 0.0
        %2144 = vmatprep.subr.mxu0 0.0
        %2145 = vmatpush1.msra.mxu0 0.0
        %2146 = vmatprep.subr.mxu0 0.0
        %2147 = vmatpush1.msra.mxu0 0.0
        %2148 = vmatprep.subr.mxu0 0.0
        %2149 = vmatpush1.msra.mxu0 0.0
        %2150 = vmatprep.subr.mxu0 0.0
        %2151 = vmatpush1.msra.mxu0 0.0
        %2152 = vmatprep.subr.mxu0 0.0
        %2153 = vmatpush1.msra.mxu0 0.0
        %2154 = vmatprep.subr.mxu0 0.0
        %2155 = vmatpush1.msra.mxu0 0.0
        %2156 = vmatprep.subr.mxu0 0.0
        %2157 = vmatpush1.msra.mxu0 0.0
        %2158 = vmatprep.subr.mxu0 0.0
        %2159 = vmatpush1.msra.mxu0 0.0
        %2160 = vmatprep.subr.mxu0 0.0
        %2161 = vmatpush1.msra.mxu0 0.0
        %2162 = vmatprep.subr.mxu0 0.0
        %2163 = vmatpush1.msra.mxu0 0.0
        %2164 = vmatprep.subr.mxu0 0.0
        %2165 = vmatpush1.msra.mxu0 0.0
        %2166 = vmatprep.subr.mxu0 0.0
        %2167 = vmatpush1.msra.mxu0 0.0
        %2168 = vmatprep.subr.mxu0 0.0
        %2169 = vmatpush1.msra.mxu0 0.0
        %2170 = vmatprep.subr.mxu0 0.0
        %2171 = vmatpush1.msra.mxu0 0.0
        %2172 = vmatprep.subr.mxu0 0.0
        %2173 = vmatpush1.msra.mxu0 0.0
        %2174 = vmatprep.subr.mxu0 0.0
        %2175 = vmatpush1.msra.mxu0 0.0
        %2176 = vmatprep.subr.mxu0 0.0
        %2177 = vmatpush1.msra.mxu0 0.0
        %2178 = vmatprep.subr.mxu0 0.0
        %2179 = vmatpush1.msra.mxu0 0.0
        %2180 = vmatprep.subr.mxu0 0.0
        %2181 = vmatpush1.msra.mxu0 0.0
        %2182 = vmatprep.subr.mxu0 0.0
        %2183 = vmatpush1.msra.mxu0 0.0
        %2184 = vmatprep.subr.mxu0 0.0
        %2185 = vmatpush1.msra.mxu0 0.0
        %2186 = vmatprep.subr.mxu0 0.0
        %2187 = vmatpush1.msra.mxu0 0.0
        %2188 = vmatprep.mubr.f32.mxu0 0.0
        %2189 = vmatmul.mubr.f32.gmra.mrb[0].mxu0 %v2012
        %v2190 = vpop.f32.mrb[0].mxu0
        %v2191 = vadd.f32 %v1994, %v2190
        %v2192 = vpop.f32.mrb[0].mxu0
        %v2193 = vadd.f32 %v1994, %v2192
        %2194 = vmatprep.mubr.f32.mxu0 0.0
        %2195 = vmatmul.mubr.f32.gmra.mrb[0].mxu0 %v2015
        %v2196 = vpop.f32.mrb[0].mxu0
        %v2197 = vadd.f32 %v1999, %v2196
        %v2198 = vpop.f32.mrb[0].mxu0
        %v2199 = vadd.f32 %v1999, %v2198
        %2200 = vmatprep.mubr.f32.mxu0 0.0
        %2201 = vmatmul.mubr.f32.gmra.mrb[0].mxu0 %v2018
        %v2202 = vpop.f32.mrb[0].mxu0
        %v2203 = vadd.f32 %v2004, %v2202
        %v2204 = vpop.f32.mrb[0].mxu0
        %v2205 = vadd.f32 %v2004, %v2204
        %2206 = vmatprep.mubr.f32.mxu0 0.0
        %2207 = vmatmul.mubr.f32.gmra.mrb[0].mxu0 %v2021
        %v2208 = vpop.f32.mrb[0].mxu0
        %v2209 = vadd.f32 %v2009, %v2208
        %v2210 = vpop.f32.mrb[0].mxu0
        %v2211 = vadd.f32 %v2009, %v2210
        %2212 = vdwg.mxu0
        %v2213 = vxor.u32 %v2102, 2147483648
        %v2214 = vxor.u32 %v2104, 2147483648
        %v2215 = vxor.u32 %v2191, 2147483648
        %v2216 = vxor.u32 %v2193, 2147483648
        %v2217 = vxor.u32 %v2108, 2147483648
        %v2218 = vxor.u32 %v2110, 2147483648
        %v2219 = vxor.u32 %v2197, 2147483648
        %v2220 = vxor.u32 %v2199, 2147483648
        %v2221 = vxor.u32 %v2114, 2147483648
        %v2222 = vxor.u32 %v2116, 2147483648
        %v2223 = vxor.u32 %v2203, 2147483648
        %v2224 = vxor.u32 %v2205, 2147483648
        %v2225 = vxor.u32 %v2120, 2147483648
        %v2226 = vxor.u32 %v2122, 2147483648
        %v2227 = vxor.u32 %v2209, 2147483648
        %v2228 = vxor.u32 %v2211, 2147483648
        %v2229 = vmul.f32 %v2213, 1.442695
        %v2230 = vpow.pop %v2229
        %v2231 = vmul.f32 %v2214, 1.442695
        %v2232 = vpow.pop %v2231
        %v2233 = vmul.f32 %v2215, 1.442695
        %v2234 = vpow.pop %v2233
        %v2235 = vmul.f32 %v2216, 1.442695
        %v2236 = vpow.pop %v2235
        %v2237 = vmul.f32 %v2217, 1.442695
        %v2238 = vpow.pop %v2237
        %v2239 = vmul.f32 %v2218, 1.442695
        %v2240 = vpow.pop %v2239
        %v2241 = vmul.f32 %v2219, 1.442695
        %v2242 = vpow.pop %v2241
        %v2243 = vmul.f32 %v2220, 1.442695
        %v2244 = vpow.pop %v2243
        %v2245 = vmul.f32 %v2221, 1.442695
        %v2246 = vpow.pop %v2245
        %v2247 = vmul.f32 %v2222, 1.442695
        %v2248 = vpow.pop %v2247
        %v2249 = vmul.f32 %v2223, 1.442695
        %v2250 = vpow.pop %v2249
        %v2251 = vmul.f32 %v2224, 1.442695
        %v2252 = vpow.pop %v2251
        %v2253 = vmul.f32 %v2225, 1.442695
        %v2254 = vpow.pop %v2253
        %v2255 = vmul.f32 %v2226, 1.442695
        %v2256 = vpow.pop %v2255
        %v2257 = vmul.f32 %v2227, 1.442695
        %v2258 = vpow.pop %v2257
        %v2259 = vmul.f32 %v2228, 1.442695
        %v2260 = vpow.pop %v2259
        %v2261 = vadd.f32 %v2230, 1.0
        %v2262 = vadd.f32 %v2232, 1.0
        %v2263 = vadd.f32 %v2234, 1.0
        %v2264 = vadd.f32 %v2236, 1.0
        %v2265 = vadd.f32 %v2238, 1.0
        %v2266 = vadd.f32 %v2240, 1.0
        %v2267 = vadd.f32 %v2242, 1.0
        %v2268 = vadd.f32 %v2244, 1.0
        %v2269 = vadd.f32 %v2246, 1.0
        %v2270 = vadd.f32 %v2248, 1.0
        %v2271 = vadd.f32 %v2250, 1.0
        %v2272 = vadd.f32 %v2252, 1.0
        %v2273 = vadd.f32 %v2254, 1.0
        %v2274 = vadd.f32 %v2256, 1.0
        %v2275 = vadd.f32 %v2258, 1.0
        %v2276 = vadd.f32 %v2260, 1.0
        %v2277 = vrcp.pop %v2261
        %v2278 = vmul.f32 1.0, %v2277
        %v2279 = vrcp.pop %v2262
        %v2280 = vmul.f32 1.0, %v2279
        %v2281 = vrcp.pop %v2263
        %v2282 = vmul.f32 1.0, %v2281
        %v2283 = vrcp.pop %v2264
        %v2284 = vmul.f32 1.0, %v2283
        %v2285 = vrcp.pop %v2265
        %v2286 = vmul.f32 1.0, %v2285
        %v2287 = vrcp.pop %v2266
        %v2288 = vmul.f32 1.0, %v2287
        %v2289 = vrcp.pop %v2267
        %v2290 = vmul.f32 1.0, %v2289
        %v2291 = vrcp.pop %v2268
        %v2292 = vmul.f32 1.0, %v2291
        %v2293 = vrcp.pop %v2269
        %v2294 = vmul.f32 1.0, %v2293
        %v2295 = vrcp.pop %v2270
        %v2296 = vmul.f32 1.0, %v2295
        %v2297 = vrcp.pop %v2271
        %v2298 = vmul.f32 1.0, %v2297
        %v2299 = vrcp.pop %v2272
        %v2300 = vmul.f32 1.0, %v2299
        %v2301 = vrcp.pop %v2273
        %v2302 = vmul.f32 1.0, %v2301
        %v2303 = vrcp.pop %v2274
        %v2304 = vmul.f32 1.0, %v2303
        %v2305 = vrcp.pop %v2275
        %v2306 = vmul.f32 1.0, %v2305
        %v2307 = vrcp.pop %v2276
        %v2308 = vmul.f32 1.0, %v2307
        %v2309 = vmul.f32 %v1811, %v2278
        %v2310 = vmul.f32 %v1812, %v2280
        %v2311 = vmul.f32 %v1813, %v2286
        %v2312 = vmul.f32 %v1814, %v2288
        %v2313 = vmul.f32 %v1815, %v2294
        %v2314 = vmul.f32 %v1816, %v2296
        %v2315 = vmul.f32 %v1817, %v2302
        %v2316 = vmul.f32 %v1818, %v2304
        %v2317 = vadd.f32 %v2309, %v443
        %v2318 = vadd.f32 %v2310, %v444
        %v2319 = vadd.f32 %v2311, %v445
        %v2320 = vadd.f32 %v2312, %v446
        %v2321 = vadd.f32 %v2313, %v447
        %v2322 = vadd.f32 %v2314, %v448
        %v2323 = vadd.f32 %v2315, %v449
        %v2324 = vadd.f32 %v2316, %v450
        %2325 = vst [vmem:[%s425] sm:$0xff] %v2317
        %2326 = vst [vmem:[%s425 + $0x8] sm:$0xff] %v2318
        %2327 = vst [vmem:[%s425 + $0x10] sm:$0xff] %v2319
        %2328 = vst [vmem:[%s425 + $0x18] sm:$0xff] %v2320
        %2329 = vst [vmem:[%s425 + $0x20] sm:$0xff] %v2321
        %2330 = vst [vmem:[%s425 + $0x28] sm:$0xff] %v2322
        %2331 = vst [vmem:[%s425 + $0x30] sm:$0xff] %v2323
        %2332 = vst [vmem:[%s425 + $0x38] sm:$0xff] %v2324
        %v2333 = vmul.f32 %v1811, %v2282
        %v2334 = vmul.f32 %v1812, %v2284
        %v2335 = vmul.f32 %v1813, %v2290
        %v2336 = vmul.f32 %v1814, %v2292
        %v2337 = vmul.f32 %v1815, %v2298
        %v2338 = vmul.f32 %v1816, %v2300
        %v2339 = vmul.f32 %v1817, %v2306
        %v2340 = vmul.f32 %v1818, %v2308
        %v2341 = vadd.f32 %v2333, %v451
        %v2342 = vadd.f32 %v2334, %v452
        %v2343 = vadd.f32 %v2335, %v453
        %v2344 = vadd.f32 %v2336, %v454
        %v2345 = vadd.f32 %v2337, %v455
        %v2346 = vadd.f32 %v2338, %v456
        %v2347 = vadd.f32 %v2339, %v457
        %v2348 = vadd.f32 %v2340, %v458
        %2349 = vst [vmem:[%s432] sm:$0xff] %v2341
        %2350 = vst [vmem:[%s432 + $0x8] sm:$0xff] %v2342
        %2351 = vst [vmem:[%s432 + $0x10] sm:$0xff] %v2343
        %2352 = vst [vmem:[%s432 + $0x18] sm:$0xff] %v2344
        %2353 = vst [vmem:[%s432 + $0x20] sm:$0xff] %v2345
        %2354 = vst [vmem:[%s432 + $0x28] sm:$0xff] %v2346
        %2355 = vst [vmem:[%s432 + $0x30] sm:$0xff] %v2347
        %2356 = vst [vmem:[%s432 + $0x38] sm:$0xff] %v2348
        %s2357 = sand.u32 %s279, 1
        %s2358 = scalar_lea.sflag [#allocation3], %s2357
        %s2359 = sand.u32 %s279, 1
        %s2360 = smul.addr %s2359, 64
        %s2361 = scalar_lea.vmem [#allocation2], %s2360
        %s2362 = sand.u32 %s305, 1
        %s2363 = scalar_lea.sflag [#allocation5], %s2362
        %s2364 = sand.u32 %s305, 1
        %s2365 = smul.addr %s2364, 64
        %s2366 = scalar_lea.vmem [#allocation4], %s2365
        // Predicated region
        $region65: #{tpu_custom_call.1} parent=63 // pred_check
          %p2367 = pneg %p289
        $region66: #{tpu_custom_call.1} parent=63 // pred_check_branch
          %2369 = sbr.rel (%p2367) target = $region68
        $region67: #{tpu_custom_call.1} parent=63 // pred_region
          %s2371 = ssub.s32 1024, 1024
          %2372 = vsyncadd %s2358, %s2371
          %s2373 = smul.addr %s30, 8
          %s2374 = smul.addr %s2373, 128
          %s2375 = scalar_lea.hbm %s11, %s2374
          %s2376 = sshll.u32 %s2361, 4
          %s2377 = int_to_ptr.vmem [resolvable:$true] %s2376
          %2382 = dma.vmem_to_hbm [thread:$0]  %s2377, 1024, %s2375, %s2358, 256, 256, 16
        $region68: #{tpu_custom_call.1} parent=63 // pred_fallthru
          _
        // Predicated region
        $region69: #{tpu_custom_call.1} parent=63 // pred_check
          %p2383 = pneg %p315
        $region70: #{tpu_custom_call.1} parent=63 // pred_check_branch
          %2385 = sbr.rel (%p2383) target = $region72
        $region71: #{tpu_custom_call.1} parent=63 // pred_region
          %s2387 = ssub.s32 1024, 1024
          %2388 = vsyncadd %s2363, %s2387
          %s2389 = smul.addr %s30, 8
          %s2390 = smul.addr %s2389, 128
          %s2391 = scalar_lea.hbm %s12, %s2390
          %s2392 = sshll.u32 %s2366, 4
          %s2393 = int_to_ptr.vmem [resolvable:$true] %s2392
          %2398 = dma.vmem_to_hbm [thread:$0]  %s2393, 1024, %s2391, %s2363, 256, 256, 16
        $region72: #{tpu_custom_call.1} parent=63 // pred_fallthru
          _
      $region64: #{tpu_custom_call.1} parent=5 // pred_fallthru
        _
      %p2399 = scmp.le.s32.totalorder 2, %s25
      // Predicated region
      $region73: #{tpu_custom_call.1} parent=5 // pred_check
        %p2400 = pneg %p2399
      $region74: #{tpu_custom_call.1} parent=5 // pred_check_branch
        %2402 = sbr.rel (%p2400) target = $region76
      $region75: #{tpu_custom_call.1} parent=5 // pred_region
        %s2403 = ssub.s32 %s25, 2
        // Predicated region
        $region77: #{tpu_custom_call.1} parent=75 // pred_check
          %p2404 = pneg %p295
        $region78: #{tpu_custom_call.1} parent=75 // pred_check_branch
          %2406 = sbr.rel (%p2404) target = $region80
        $region79: #{tpu_custom_call.1} parent=75 // pred_region
          %s2407 = sand.u32 %s280, 1
          %s2408 = scalar_lea.sflag [#allocation3], %s2407
          %s2409 = sand.u32 %s280, 1
          %s2410 = smul.addr %s2409, 64
          %s2411 = scalar_lea.vmem [#allocation2], %s2410
          %2412 = dma.done %s2408, 1024
        $region80: #{tpu_custom_call.1} parent=75 // pred_fallthru
          _
        // Predicated region
        $region81: #{tpu_custom_call.1} parent=75 // pred_check
          %p2413 = pneg %p321
        $region82: #{tpu_custom_call.1} parent=75 // pred_check_branch
          %2415 = sbr.rel (%p2413) target = $region84
        $region83: #{tpu_custom_call.1} parent=75 // pred_region
          %s2416 = sand.u32 %s306, 1
          %s2417 = scalar_lea.sflag [#allocation5], %s2416
          %s2418 = sand.u32 %s306, 1
          %s2419 = smul.addr %s2418, 64
          %s2420 = scalar_lea.vmem [#allocation4], %s2419
          %2421 = dma.done %s2417, 1024
        $region84: #{tpu_custom_call.1} parent=75 // pred_fallthru
          _
      $region76: #{tpu_custom_call.1} parent=5 // pred_fallthru
        _
    $region6: #{tpu_custom_call.1} parent=1 // loop_footer
      %s29 = sadd.s32 1, %s25
    $region7: #{tpu_custom_call.1} parent=1 // loop_footer_branch
      %24 = sbr.rel target = $region3
    $region8: #{tpu_custom_call.1} parent=1 // loop_exit
      _
    %2422 = vsyncpa [#allocation3], 1
    %s2423 = scalar_lea.sflag [#allocation3], 1
    %2424 = vsyncpa %s2423, 1
    %2425 = vsyncpa [#allocation5], 1
    %s2426 = scalar_lea.sflag [#allocation5], 1
    %2427 = vsyncpa %s2426, 1

</llo_original>
